<compile_context>
chip_gen: v6e
topology: v6e:2x2x1
jax: 0.10.0
libtpu: 0.0.40
codegen_flags: <defaults>
</compile_context>

<pallas_src>
import functools

import numpy as np
import jax
import jax.numpy as jnp
from jax.experimental import pallas as pl
from jax.experimental.pallas import tpu as pltpu

CONTEXT_DIM = 16
TRANS_DIM = 64          # output dim of combin_trans_fc / device_trans_fc
HIDDEN = 64             # hidden_size (must be 64 so fc2 = Linear(64, 32) composes)
FC2_OUT = 32
NUM_CLASSES = 2
CONSIS_THRESHOLD = 1e-3
PAIRWISE_EPS = 1e-6     # torch F.pairwise_distance default eps


# ------------------------------ helpers --------------------------------------

def _round_up(x, m):
    return ((x + m - 1) // m) * m


def _pad_axis(x, size, axis):
    pad = size - x.shape[axis]
    if pad <= 0:
        return x
    widths = [(0, 0)] * x.ndim
    widths[axis] = (0, pad)
    return jnp.pad(x, widths)


def _tile_policy(B, N):
    """Per-generation tile caps and scoped-VMEM limit (bytes)."""
    try:
        kind = jax.devices()[0].device_kind.lower()
    except Exception:  # pragma: no cover
        kind = ""
    if "v6" in kind:
        # 128 MiB physical VMEM, 32 MiB scoped default -> go big.
        bt_cap, nt_cap, vmem = 512, 256, 96 << 20
    elif "v5 lite" in kind or "v5e" in kind:
        # 128 MiB physical, but only 16 MiB scoped default.
        bt_cap, nt_cap, vmem = 256, 256, 96 << 20
    else:
        # v7x (64 MiB / TC, 2 TCs share HBM) and the conservative default.
        bt_cap, nt_cap, vmem = 256, 128, 40 << 20
    bt = min(bt_cap, _round_up(max(B, 1), 8))
    nt = min(nt_cap, _round_up(max(N, 1), 8))
    return bt, nt, vmem


# ----------------------------- Pallas kernels --------------------------------

def device_transform_kernel(x_ref, w_ref, b_ref, o_ref):
    # device_trans_fc applied once per device node, row-tiled.
    o_ref[...] = (jnp.dot(x_ref[...], w_ref[...],
                          preferred_element_type=jnp.float32) + b_ref[...])


def fused_gather_agg_mlp_kernel(nidx_ref,                       # scalar prefetch (SMEM)
                                cnt_ref, comb_ref, dev_ref, vtab_ref,
                                wct_ref, bct_ref, w1_ref, b1_ref,
                                w2_ref, b2_ref, w3_ref, b3_ref,
                                out_ref,
                                gbuf, u_sc, acc_s, acc_sv, acc_uv,
                                *, bt, nt):
    bi = pl.program_id(0)
    nj = pl.program_id(1)
    n_steps = pl.num_programs(1)

    # ---- per batch-tile init: zero accumulators, combin_trans_fc once --------
    @pl.when(nj == 0)
    def _():
        acc_s[...] = jnp.zeros_like(acc_s)
        acc_sv[...] = jnp.zeros_like(acc_sv)
        acc_uv[...] = jnp.zeros_like(acc_uv)
        u_sc[...] = (jnp.dot(comb_ref[...], wct_ref[...],
                             preferred_element_type=jnp.float32) + bct_ref[...])

    # ---- in-kernel row gather of v_table for this (bt x nt) tile -------------
    b_off = bi * bt
    n_off = nj * nt

    @pl.loop(0, nt)
    def _(n):
        @pl.loop(0, bt)
        def _(b):
            dev_id = nidx_ref[b_off + b, n_off + n]        # SMEM scalar read
            gbuf[pl.ds(n * bt + b, 1), :] = vtab_ref[pl.ds(dev_id, 1), :]

    g = gbuf[...].reshape(nt, bt, TRANS_DIM)               # (nt, bt, 64)

    # ---- consis score: distance reduce on MXU, exp on EUP --------------------
    u = u_sc[...]                                          # (bt, 64)
    diff = u[None, :, :] - g + PAIRWISE_EPS                # (nt, bt, 64)
    sq = diff * diff
    ones_col = jnp.ones((TRANS_DIM, 1), dtype=jnp.float32)
    d2 = jnp.dot(sq.reshape(nt * bt, TRANS_DIM), ones_col,
                 preferred_element_type=jnp.float32)       # (nt*bt, 1)
    dist = jnp.sqrt(d2).reshape(nt, bt, 1)
    score = jnp.exp(-dist)
    score = jnp.where(score <= CONSIS_THRESHOLD, 0.0, score)

    slot = jax.lax.broadcasted_iota(jnp.int32, (nt, 1, 1), 0) + n_off
    valid = (slot < cnt_ref[...][None, :, :]).astype(jnp.float32)   # (nt, bt, 1)
    score = score * valid

    # ---- online accumulation over the neighbor axis (leading-axis sums) ------
    acc_s[...] += jnp.sum(score, axis=0)                   # (bt, 1)
    acc_sv[...] += jnp.sum(score * g, axis=0)              # (bt, 64)
    acc_uv[...] += jnp.sum(valid * g, axis=0)              # (bt, 64)

    # ---- finalize: weighted mean + fused MLP head -----------------------------
    @pl.when(nj == n_steps - 1)
    def _():
        s = acc_s[...]
        has = s > 0.0
        inv_s = pl.reciprocal(jnp.where(has, s, 1.0), approx=True)
        cntf = jnp.maximum(cnt_ref[...].astype(jnp.float32), 1.0)
        inv_c = pl.reciprocal(cntf, approx=True)
        # TODO(synk): torch WeightedRandomSampler(100 draws) + mean is replaced
        # by its exact expectation (score-weighted mean; uniform mean over valid
        # neighbors when all scores are zero; zero vector for empty edges).
        agg = jnp.where(has, acc_sv[...] * inv_s, acc_uv[...] * inv_c)   # (bt, 64)

        # merged fc1 over the in-register [device | combin | agg] concat
        fusion = jnp.concatenate([dev_ref[...], comb_ref[...], agg], axis=-1)
        h = (jnp.dot(fusion, w1_ref[...], preferred_element_type=jnp.float32)
             + b1_ref[...])
        h = jnp.maximum(h, 0.0)
        # TODO(synk): dropout is identity here (eval-mode semantics).
        h = jnp.dot(h, w2_ref[...], preferred_element_type=jnp.float32) + b2_ref[...]
        h = jnp.maximum(h, 0.0)
        h = jnp.dot(h, w3_ref[...], preferred_element_type=jnp.float32) + b3_ref[...]

        # numerically stable sigmoid
        z = jnp.exp(-jnp.abs(h))
        out_ref[...] = jnp.where(h >= 0.0, 1.0 / (1.0 + z), z / (1.0 + z))


# ------------------------------ wrappers --------------------------------------

def device_transform_pallas(x, w, b, *, dt=None):
    n, d = x.shape
    if dt is None:
        dt = min(512, _round_up(n, 8))
    n_pad = _round_up(max(n, dt), dt)
    x = _pad_axis(x, n_pad, 0)
    return pl.pallas_call(
        device_transform_kernel,
        out_shape=jax.ShapeDtypeStruct((n_pad, TRANS_DIM), jnp.float32),
        grid=(n_pad // dt,),
        in_specs=[pl.BlockSpec((dt, d), lambda i: (i, 0)),
                  pl.BlockSpec((d, TRANS_DIM), lambda i: (0, 0)),
                  pl.BlockSpec((1, TRANS_DIM), lambda i: (0, 0))],
        out_specs=pl.BlockSpec((dt, TRANS_DIM), lambda i: (i, 0)),
        compiler_params=pltpu.CompilerParams(dimension_semantics=("parallel",)),
    )(x, w, b)


def fused_gather_agg_mlp_pallas(neib_idx, counts, comb, dev, v_table,
                                wct, bct, w1, b1, w2, b2, w3, b3,
                                *, bt=None, nt=None, vmem_limit_bytes=None):
    B, c_in = comb.shape
    d_pad = dev.shape[1]
    N = neib_idx.shape[1]
    num_dev_pad, tdim = v_table.shape
    hidden = b1.shape[1]
    k1 = w1.shape[0]

    pbt, pnt, pvmem = _tile_policy(B, N)
    bt = pbt if bt is None else bt
    nt = pnt if nt is None else nt

    Bp = _round_up(B, bt)
    Np = _round_up(N, nt)

    neib_idx = _pad_axis(_pad_axis(neib_idx.astype(jnp.int32), Bp, 0), Np, 1)
    counts = _pad_axis(counts.astype(jnp.int32), Bp, 0)
    comb = _pad_axis(comb, Bp, 0)
    dev = _pad_axis(dev, Bp, 0)

    # Raise the scoped VMEM limit only when the working set actually needs it.
    est_bytes = 4 * (num_dev_pad * tdim + 2 * nt * bt * tdim
                     + 4 * bt * tdim + 2 * bt * (c_in + d_pad) + k1 * hidden)
    if vmem_limit_bytes is None and est_bytes > (12 << 20):
        vmem_limit_bytes = pvmem

    kernel = functools.partial(fused_gather_agg_mlp_kernel, bt=bt, nt=nt)

    grid_spec = pltpu.PrefetchScalarGridSpec(
        num_scalar_prefetch=1,                       # neib_idx -> SMEM
        grid=(Bp // bt, Np // nt),
        in_specs=[
            pl.BlockSpec((bt, 1), lambda bi, nj, nidx: (bi, 0)),
            pl.BlockSpec((bt, c_in), lambda bi, nj, nidx: (bi, 0)),
            pl.BlockSpec((bt, d_pad), lambda bi, nj, nidx: (bi, 0)),
            pl.BlockSpec((num_dev_pad, tdim), lambda bi, nj, nidx: (0, 0)),
            pl.BlockSpec((c_in, tdim), lambda bi, nj, nidx: (0, 0)),
            pl.BlockSpec((1, tdim), lambda bi, nj, nidx: (0, 0)),
            pl.BlockSpec((k1, hidden), lambda bi, nj, nidx: (0, 0)),
            pl.BlockSpec((1, hidden), lambda bi, nj, nidx: (0, 0)),
            pl.BlockSpec((hidden, FC2_OUT), lambda bi, nj, nidx: (0, 0)),
            pl.BlockSpec((1, FC2_OUT), lambda bi, nj, nidx: (0, 0)),
            pl.BlockSpec((FC2_OUT, NUM_CLASSES), lambda bi, nj, nidx: (0, 0)),
            pl.BlockSpec((1, NUM_CLASSES), lambda bi, nj, nidx: (0, 0)),
        ],
        out_specs=pl.BlockSpec((bt, NUM_CLASSES), lambda bi, nj, nidx: (bi, 0)),
        scratch_shapes=[
            pltpu.VMEM((nt * bt, TRANS_DIM), jnp.float32),   # gathered neighbor rows
            pltpu.VMEM((bt, TRANS_DIM), jnp.float32),        # u (combin transform)
            pltpu.VMEM((bt, 1), jnp.float32),                # sum(score)
            pltpu.VMEM((bt, TRANS_DIM), jnp.float32),        # sum(score * v)
            pltpu.VMEM((bt, TRANS_DIM), jnp.float32),        # sum(valid * v)
        ],
    )
    out = pl.pallas_call(
        kernel,
        out_shape=jax.ShapeDtypeStruct((Bp, NUM_CLASSES), jnp.float32),
        grid_spec=grid_spec,
        compiler_params=pltpu.CompilerParams(
            dimension_semantics=("parallel", "arbitrary"),
            vmem_limit_bytes=vmem_limit_bytes),
    )(neib_idx, counts, comb, dev, v_table,
      wct, bct, w1, b1, w2, b2, w3, b3)
    return out[:B]


# ------------------------------ JAX glue --------------------------------------

def concat_embed_feats(feats, embed_tables, num_categories):
    """Mirror of GraphConsis.concat_embed_feats (gather + concat only)."""
    d = feats.shape[1]
    numeric = feats[:, :d - num_categories]
    cat = feats[:, d - num_categories:].astype(jnp.int32)
    outs = [numeric]
    for k, table in enumerate(embed_tables):
        outs.append(table[cat[:, k]])
    return jnp.concatenate(outs, axis=1)


def graphconsis_forward(params, edge_index, combin_feats_raw, device_feats_raw,
                        neib_idx, neib_counts, *, bt=None, nt=None, dt=None):
    combin_idxes = edge_index[:, 0]
    device_idxes = edge_index[:, 1]

    # ---- feature assembly (plain-JAX glue: gathers + concats) ---------------
    combin_feats_batch = combin_feats_raw[combin_idxes]
    combin_feats_batch = concat_embed_feats(
        combin_feats_batch, params["combin_embeds"], len(params["combin_embeds"]))  # [B, C_in]

    device_feats = concat_embed_feats(
        device_feats_raw, params["device_embeds"], len(params["device_embeds"]))
    device_feats = jnp.concatenate([params["context_embed"], device_feats], axis=1)  # [num_dev, D_in]

    d_in = device_feats.shape[1]
    d_pad = _round_up(d_in, 8)                      # 30 -> 32 aligned contraction dim
    device_feats_p = jnp.pad(device_feats, ((0, 0), (0, d_pad - d_in)))
    wdt_p = jnp.pad(params["wdt"], ((0, d_pad - d_in), (0, 0)))

    device_feats_batch = device_feats_p[device_idxes]              # [B, d_pad]

    # ---- device_trans_fc ONCE per device node (kernel A, row-tiled) ----------
    v_table = device_transform_pallas(device_feats_p, wdt_p, params["bdt"], dt=dt)

    # ---- fc1 weight reassembled for the in-kernel [dev | comb | agg] concat --
    c_in = combin_feats_batch.shape[1]
    w1 = params["w1"]
    w1_full = jnp.concatenate(
        [jnp.pad(w1[:d_in], ((0, d_pad - d_in), (0, 0))),
         w1[d_in:d_in + c_in],
         w1[d_in + c_in:]], axis=0)                                # [d_pad+c_in+64, H]

    # ---- fused in-kernel gather + online aggregation + MLP head (kernel B) ---
    return fused_gather_agg_mlp_pallas(
        neib_idx, neib_counts, combin_feats_batch, device_feats_batch, v_table,
        params["wct"], params["bct"], w1_full, params["b1"],
        params["w2"], params["b2"], params["w3"], params["b3"],
        bt=bt, nt=nt)


# --------------------------- pure-JAX reference --------------------------------

def _reference_forward(params, edge_index, combin_feats_raw, device_feats_raw,
                       neib_idx, neib_counts):
    combin_idxes = edge_index[:, 0]
    device_idxes = edge_index[:, 1]
    comb = concat_embed_feats(combin_feats_raw[combin_idxes],
                              params["combin_embeds"], len(params["combin_embeds"]))
    devf = concat_embed_feats(device_feats_raw,
                              params["device_embeds"], len(params["device_embeds"]))
    devf = jnp.concatenate([params["context_embed"], devf], axis=1)
    dev_b = devf[device_idxes]
    v_table = devf @ params["wdt"] + params["bdt"]
    u = comb @ params["wct"] + params["bct"]
    v = v_table[neib_idx]                                          # (B, N, 64)
    diff = u[:, None, :] - v + PAIRWISE_EPS
    dist = jnp.sqrt(jnp.sum(diff * diff, axis=-1))
    score = jnp.exp(-dist)
    score = jnp.where(score <= CONSIS_THRESHOLD, 0.0, score)
    N = neib_idx.shape[1]
    valid = (jnp.arange(N)[None, :] < neib_counts).astype(jnp.float32)
    score = score * valid
    ssum = score.sum(axis=-1, keepdims=True)
    cntf = jnp.maximum(neib_counts.astype(jnp.float32), 1.0)
    weights = jnp.where(ssum > 0.0, score / jnp.where(ssum > 0.0, ssum, 1.0),
                        valid / cntf)
    agg = jnp.einsum("bn,bnd->bd", weights, v)
    fusion = jnp.concatenate([dev_b, comb, agg], axis=1)
    h = jnp.maximum(fusion @ params["w1"] + params["b1"], 0.0)
    h = jnp.maximum(h @ params["w2"] + params["b2"], 0.0)
    h = h @ params["w3"] + params["b3"]
    return jax.nn.sigmoid(h)


# ------------------------------ main -------------------------------------------

if __name__ == "__main__":
    key = jax.random.PRNGKey(0)

    num_combin, num_device = 8, 16
    combin_numeric, device_numeric = 10, 6
    combin_cat_desc = [(6, 6)]                  # (vocab, embed_dim)
    device_cat_desc = [(5, 4), (7, 4)]
    B, N_MAX = 12, 24

    combin_input_size = combin_numeric + sum(d for _, d in combin_cat_desc)      # 16
    device_input_size = device_numeric + CONTEXT_DIM + sum(d for _, d in device_cat_desc)  # 30
    fc1_in = TRANS_DIM + device_input_size + combin_input_size                   # 110

    keys = jax.random.split(key, 16)

    # -------- raw node features (last columns hold integer category ids) -----
    combin_feats_raw = jnp.concatenate(
        [jax.random.normal(keys[0], (num_combin, combin_numeric), jnp.float32),
         (jnp.arange(num_combin) % combin_cat_desc[0][0]).astype(jnp.float32)[:, None]],
        axis=1)                                                                  # [8, 11]
    device_feats_raw = jnp.concatenate(
        [jax.random.normal(keys[1], (num_device, device_numeric), jnp.float32),
         (jnp.arange(num_device) % device_cat_desc[0][0]).astype(jnp.float32)[:, None],
         (jnp.arange(num_device) % device_cat_desc[1][0]).astype(jnp.float32)[:, None]],
        axis=1)                                                                  # [16, 8]

    # -------- synthetic training edges and neighbor caches --------------------
    edge_index_train = np.array(
        [[i % num_combin, (3 * i + i // num_combin) % num_device, i % 2]
         for i in range(24)], dtype=np.int64)
    normal_cache, bot_cache = {}, {}
    for c, d, lbl in edge_index_train:
        normal_cache.setdefault(int(c), set())
        bot_cache.setdefault(int(c), set())
        (normal_cache if lbl == 0 else bot_cache)[int(c)].add(int(d))

    # batch of edges = first B training edges; neighbor lists padded to N_MAX
    edge_index_np = edge_index_train[:B]
    neib_idx_np = np.zeros((B, N_MAX), dtype=np.int32)
    neib_cnt_np = np.zeros((B, 1), dtype=np.int32)
    for r, (c, _, _) in enumerate(edge_index_np):
        nb = sorted(normal_cache[int(c)])[:9000] + sorted(bot_cache[int(c)])[:2000]
        neib_idx_np[r, :len(nb)] = np.asarray(nb, dtype=np.int32)
        neib_cnt_np[r, 0] = len(nb)

    edge_index = jnp.asarray(edge_index_np, dtype=jnp.int32)
    neib_idx = jnp.asarray(neib_idx_np)
    neib_counts = jnp.asarray(neib_cnt_np)

    # -------- deterministic parameters -----------------------------------------
    def init(k, shape, scale=0.1):
        return scale * jax.random.normal(k, shape, jnp.float32)

    params = {
        "context_embed": init(keys[2], (num_device, CONTEXT_DIM)),
        "device_embeds": [init(keys[3], device_cat_desc[0]),
                          init(keys[4], device_cat_desc[1])],
        "combin_embeds": [init(keys[5], combin_cat_desc[0])],
        "wct": init(keys[6], (combin_input_size, TRANS_DIM)),
        "bct": init(keys[7], (1, TRANS_DIM)),
        "wdt": init(keys[8], (device_input_size, TRANS_DIM)),
        "bdt": init(keys[9], (1, TRANS_DIM)),
        "w1": init(keys[10], (fc1_in, HIDDEN)),
        "b1": init(keys[11], (1, HIDDEN)),
        "w2": init(keys[12], (HIDDEN, FC2_OUT)),
        "b2": init(keys[13], (1, FC2_OUT)),
        "w3": init(keys[14], (FC2_OUT, NUM_CLASSES)),
        "b3": init(keys[15], (1, NUM_CLASSES)),
    }

    # small tiles chosen so the demo exercises multiple batch tiles and multiple
    # neighbor (reduction) steps: grid = (2 batch tiles, 3 neighbor tiles).
    fwd = jax.jit(functools.partial(graphconsis_forward, bt=8, nt=8, dt=8))
    out = fwd(params, edge_index, combin_feats_raw, device_feats_raw,
              neib_idx, neib_counts)
    out = jax.block_until_ready(out)

    assert out.shape == (B, NUM_CLASSES)
    assert bool(jnp.all(jnp.isfinite(out)))

    ref = _reference_forward(params, edge_index, combin_feats_raw, device_feats_raw,
                             neib_idx, neib_counts)
    max_err = float(jnp.max(jnp.abs(out - ref)))
    assert max_err < 1e-2, f"mismatch vs pure-JAX reference: {max_err}"
    print("KERNEL_OK")
</pallas_src>

<mosaic_0001>
module attributes {stable_mosaic.version = 11 : i64} {
  func.func @device_transform_kernel(%arg0: i32, %arg1: memref<8x32xf32, #tpu.memory_space<vmem>>, %arg2: memref<32x64xf32, #tpu.memory_space<vmem>>, %arg3: memref<1x64xf32, #tpu.memory_space<vmem>>, %arg4: memref<8x64xf32, #tpu.memory_space<vmem>>) attributes {dimension_semantics = [#tpu.dimension_semantics<parallel>], iteration_bounds = array<i64: 2>, scalar_prefetch = 0 : i64, scratch_operands = 0 : i64, tpu.core_type = #tpu.core_type<tc>, window_params = [{transform_indices = @transform_0, window_bounds = array<i64: 8, 32>}, {pipeline_mode = #tpu.pipeline_mode<synchronous>, transform_indices = @transform_1, window_bounds = array<i64: 32, 64>}, {pipeline_mode = #tpu.pipeline_mode<synchronous>, transform_indices = @transform_2, window_bounds = array<i64: 1, 64>}, {transform_indices = @transform_3, window_bounds = array<i64: 8, 64>}]} {
    %c0 = arith.constant 0 : index
    %c0_0 = arith.constant 0 : index
    %0 = vector.load %arg1[%c0, %c0_0] : memref<8x32xf32, #tpu.memory_space<vmem>>, vector<8x32xf32>
    %c0_1 = arith.constant 0 : index
    %c0_2 = arith.constant 0 : index
    %1 = vector.load %arg2[%c0_1, %c0_2] : memref<32x64xf32, #tpu.memory_space<vmem>>, vector<32x64xf32>
    %cst = arith.constant dense<0.000000e+00> : vector<8x64xf32>
    %2 = tpu.matmul %0, %1, %cst {dimension_numbers = #tpu.dot_dimension_numbers<[1], [0], [0], [1], [0, 0, 1, 1], [], []>} : vector<8x32xf32>, vector<32x64xf32>, vector<8x64xf32> -> vector<8x64xf32>
    %c0_3 = arith.constant 0 : index
    %c0_4 = arith.constant 0 : index
    %3 = vector.load %arg3[%c0_3, %c0_4] : memref<1x64xf32, #tpu.memory_space<vmem>>, vector<1x64xf32>
    %4 = vector.broadcast %3 : vector<1x64xf32> to vector<8x64xf32>
    %5 = arith.addf %2, %4 : vector<8x64xf32>
    %c0_5 = arith.constant 0 : index
    %c0_6 = arith.constant 0 : index
    %6 = vector.load %arg4[%c0_5, %c0_6] : memref<8x64xf32, #tpu.memory_space<vmem>>, vector<8x64xf32>
    tpu.vector_store %arg4[%c0_5, %c0_6], %5 {strides = array<i32>} : memref<8x64xf32, #tpu.memory_space<vmem>>, vector<8x64xf32>,
    return
  }
  func.func @transform_0(%arg0: i32) -> (i32, i32) {
    %c0_i32 = arith.constant 0 : i32
    %c0_i32_0 = arith.constant 0 : i32
    return %arg0, %c0_i32 : i32, i32
  }
  func.func @transform_1(%arg0: i32) -> (i32, i32) {
    %c0_i32 = arith.constant 0 : i32
    %c0_i32_0 = arith.constant 0 : i32
    %c0_i32_1 = arith.constant 0 : i32
    return %c0_i32, %c0_i32_0 : i32, i32
  }
  func.func @transform_2(%arg0: i32) -> (i32, i32) {
    %c0_i32 = arith.constant 0 : i32
    %c0_i32_0 = arith.constant 0 : i32
    %c0_i32_1 = arith.constant 0 : i32
    return %c0_i32, %c0_i32_0 : i32, i32
  }
  func.func @transform_3(%arg0: i32) -> (i32, i32) {
    %c0_i32 = arith.constant 0 : i32
    %c0_i32_0 = arith.constant 0 : i32
    return %arg0, %c0_i32 : i32, i32
  }
}

module attributes {stable_mosaic.version = 11 : i64} {
  func.func @fused_gather_agg_mlp_kernel(%arg0: i32, %arg1: i32, %arg2: memref<16x24xi32, #tpu.memory_space<smem>>, %arg3: memref<8x1xi32, #tpu.memory_space<vmem>>, %arg4: memref<8x16xf32, #tpu.memory_space<vmem>>, %arg5: memref<8x32xf32, #tpu.memory_space<vmem>>, %arg6: memref<16x64xf32, #tpu.memory_space<vmem>>, %arg7: memref<16x64xf32, #tpu.memory_space<vmem>>, %arg8: memref<1x64xf32, #tpu.memory_space<vmem>>, %arg9: memref<112x64xf32, #tpu.memory_space<vmem>>, %arg10: memref<1x64xf32, #tpu.memory_space<vmem>>, %arg11: memref<64x32xf32, #tpu.memory_space<vmem>>, %arg12: memref<1x32xf32, #tpu.memory_space<vmem>>, %arg13: memref<32x2xf32, #tpu.memory_space<vmem>>, %arg14: memref<1x2xf32, #tpu.memory_space<vmem>>, %arg15: memref<8x2xf32, #tpu.memory_space<vmem>>, %arg16: memref<64x64xf32, #tpu.memory_space<vmem>>, %arg17: memref<8x64xf32, #tpu.memory_space<vmem>>, %arg18: memref<8x1xf32, #tpu.memory_space<vmem>>, %arg19: memref<8x64xf32, #tpu.memory_space<vmem>>, %arg20: memref<8x64xf32, #tpu.memory_space<vmem>>) attributes {dimension_semantics = [#tpu.dimension_semantics<parallel>, #tpu.dimension_semantics<arbitrary>], iteration_bounds = array<i64: 2, 3>, scalar_prefetch = 1 : i64, scratch_operands = 5 : i64, tpu.core_type = #tpu.core_type<tc>, window_params = [{transform_indices = @transform_0, window_bounds = array<i64: 8, 1>}, {transform_indices = @transform_1, window_bounds = array<i64: 8, 16>}, {transform_indices = @transform_2, window_bounds = array<i64: 8, 32>}, {pipeline_mode = #tpu.pipeline_mode<synchronous>, transform_indices = @transform_3, window_bounds = array<i64: 16, 64>}, {pipeline_mode = #tpu.pipeline_mode<synchronous>, transform_indices = @transform_4, window_bounds = array<i64: 16, 64>}, {pipeline_mode = #tpu.pipeline_mode<synchronous>, transform_indices = @transform_5, window_bounds = array<i64: 1, 64>}, {pipeline_mode = #tpu.pipeline_mode<synchronous>, transform_indices = @transform_6, window_bounds = array<i64: 112, 64>}, {pipeline_mode = #tpu.pipeline_mode<synchronous>, transform_indices = @transform_7, window_bounds = array<i64: 1, 64>}, {pipeline_mode = #tpu.pipeline_mode<synchronous>, transform_indices = @transform_8, window_bounds = array<i64: 64, 32>}, {pipeline_mode = #tpu.pipeline_mode<synchronous>, transform_indices = @transform_9, window_bounds = array<i64: 1, 32>}, {pipeline_mode = #tpu.pipeline_mode<synchronous>, transform_indices = @transform_10, window_bounds = array<i64: 32, 2>}, {pipeline_mode = #tpu.pipeline_mode<synchronous>, transform_indices = @transform_11, window_bounds = array<i64: 1, 2>}, {transform_indices = @transform_12, window_bounds = array<i64: 8, 2>}]} {
    %c0_i32 = arith.constant 0 : i32
    %0 = arith.cmpi eq, %arg1, %c0_i32 : i32
    %1 = arith.extui %0 : i1 to i32
    %c0_i32_0 = arith.constant 0 : i32
    %2 = arith.cmpi ne, %1, %c0_i32_0 : i32
    scf.if %2 {
      %cst_31 = arith.constant 0.000000e+00 : f32
      %57 = vector.broadcast %cst_31 : f32 to vector<8x1xf32>
      %c0_32 = arith.constant 0 : index
      %c0_33 = arith.constant 0 : index
      %58 = vector.load %arg18[%c0_32, %c0_33] : memref<8x1xf32, #tpu.memory_space<vmem>>, vector<8x1xf32>
      tpu.vector_store %arg18[%c0_32, %c0_33], %57 {strides = array<i32>} : memref<8x1xf32, #tpu.memory_space<vmem>>, vector<8x1xf32>,
      %cst_34 = arith.constant 0.000000e+00 : f32
      %59 = vector.broadcast %cst_34 : f32 to vector<8x64xf32>
      %c0_35 = arith.constant 0 : index
      %c0_36 = arith.constant 0 : index
      %60 = vector.load %arg19[%c0_35, %c0_36] : memref<8x64xf32, #tpu.memory_space<vmem>>, vector<8x64xf32>
      tpu.vector_store %arg19[%c0_35, %c0_36], %59 {strides = array<i32>} : memref<8x64xf32, #tpu.memory_space<vmem>>, vector<8x64xf32>,
      %cst_37 = arith.constant 0.000000e+00 : f32
      %61 = vector.broadcast %cst_37 : f32 to vector<8x64xf32>
      %c0_38 = arith.constant 0 : index
      %c0_39 = arith.constant 0 : index
      %62 = vector.load %arg20[%c0_38, %c0_39] : memref<8x64xf32, #tpu.memory_space<vmem>>, vector<8x64xf32>
      tpu.vector_store %arg20[%c0_38, %c0_39], %61 {strides = array<i32>} : memref<8x64xf32, #tpu.memory_space<vmem>>, vector<8x64xf32>,
      %c0_40 = arith.constant 0 : index
      %c0_41 = arith.constant 0 : index
      %63 = vector.load %arg4[%c0_40, %c0_41] : memref<8x16xf32, #tpu.memory_space<vmem>>, vector<8x16xf32>
      %c0_42 = arith.constant 0 : index
      %c0_43 = arith.constant 0 : index
      %64 = vector.load %arg7[%c0_42, %c0_43] : memref<16x64xf32, #tpu.memory_space<vmem>>, vector<16x64xf32>
      %cst_44 = arith.constant dense<0.000000e+00> : vector<8x64xf32>
      %65 = tpu.matmul %63, %64, %cst_44 {dimension_numbers = #tpu.dot_dimension_numbers<[1], [0], [0], [1], [0, 0, 1, 1], [], []>} : vector<8x16xf32>, vector<16x64xf32>, vector<8x64xf32> -> vector<8x64xf32>
      %c0_45 = arith.constant 0 : index
      %c0_46 = arith.constant 0 : index
      %66 = vector.load %arg8[%c0_45, %c0_46] : memref<1x64xf32, #tpu.memory_space<vmem>>, vector<1x64xf32>
      %67 = vector.broadcast %66 : vector<1x64xf32> to vector<8x64xf32>
      %68 = arith.addf %65, %67 : vector<8x64xf32>
      %c0_47 = arith.constant 0 : index
      %c0_48 = arith.constant 0 : index
      %69 = vector.load %arg17[%c0_47, %c0_48] : memref<8x64xf32, #tpu.memory_space<vmem>>, vector<8x64xf32>
      tpu.vector_store %arg17[%c0_47, %c0_48], %68 {strides = array<i32>} : memref<8x64xf32, #tpu.memory_space<vmem>>, vector<8x64xf32>,
    } else {
    }
    %c8_i32 = arith.constant 8 : i32
    %3 = arith.muli %arg0, %c8_i32 : i32
    %c8_i32_1 = arith.constant 8 : i32
    %4 = arith.muli %arg1, %c8_i32_1 : i32
    %c0_i32_2 = arith.constant 0 : i32
    %c8_i32_3 = arith.constant 8 : i32
    %5 = arith.addi %c0_i32_2, %c8_i32_3 : i32
    %c1_i32 = arith.constant 1 : i32
    scf.for %arg21 = %c0_i32_2 to %5 step %c1_i32  : i32 {
      %c1_i32_31 = arith.constant 1 : i32
      %57 = arith.muli %arg21, %c1_i32_31 : i32
      %c0_i32_32 = arith.constant 0 : i32
      %58 = arith.addi %c0_i32_32, %57 : i32
      %c0_i32_33 = arith.constant 0 : i32
      %c8_i32_34 = arith.constant 8 : i32
      %59 = arith.addi %c0_i32_33, %c8_i32_34 : i32
      %c1_i32_35 = arith.constant 1 : i32
      scf.for %arg22 = %c0_i32_33 to %59 step %c1_i32_35  : i32 {
        %c1_i32_37 = arith.constant 1 : i32
        %60 = arith.muli %arg22, %c1_i32_37 : i32
        %c0_i32_38 = arith.constant 0 : i32
        %61 = arith.addi %c0_i32_38, %60 : i32
        %62 = arith.addi %3, %61 : i32
        %63 = arith.addi %4, %58 : i32
        %64 = arith.index_cast %62 : i32 to index
        %65 = arith.index_cast %63 : i32 to index
        %66 = memref.load %arg2[%64, %65] : memref<16x24xi32, #tpu.memory_space<smem>>
        %67 = arith.index_cast %66 : i32 to index
        %c0_39 = arith.constant 0 : index
        %68 = vector.load %arg6[%67, %c0_39] : memref<16x64xf32, #tpu.memory_space<vmem>>, vector<1x64xf32>
        %c8_i32_40 = arith.constant 8 : i32
        %69 = arith.muli %58, %c8_i32_40 : i32
        %70 = arith.addi %69, %61 : i32
        %71 = arith.index_cast %70 : i32 to index
        %c0_41 = arith.constant 0 : index
        %72 = vector.load %arg16[%71, %c0_41] : memref<64x64xf32, #tpu.memory_space<vmem>>, vector<1x64xf32>
        tpu.vector_store %arg16[%71, %c0_41], %68 {strides = array<i32>} : memref<64x64xf32, #tpu.memory_space<vmem>>, vector<1x64xf32>,
      }
      %c8_i32_36 = arith.constant 8 : i32
    }
    %c8_i32_4 = arith.constant 8 : i32
    %c0 = arith.constant 0 : index
    %c0_5 = arith.constant 0 : index
    %6 = vector.load %arg16[%c0, %c0_5] : memref<64x64xf32, #tpu.memory_space<vmem>>, vector<64x64xf32>
    %7 = vector.shape_cast %6 : vector<64x64xf32> to vector<8x8x64xf32>
    %c0_6 = arith.constant 0 : index
    %c0_7 = arith.constant 0 : index
    %8 = vector.load %arg17[%c0_6, %c0_7] : memref<8x64xf32, #tpu.memory_space<vmem>>, vector<8x64xf32>
    %9 = vector.shape_cast %8 : vector<8x64xf32> to vector<1x8x64xf32>
    %10 = vector.broadcast %9 : vector<1x8x64xf32> to vector<8x8x64xf32>
    %11 = arith.subf %10, %7 : vector<8x8x64xf32>
    %cst = arith.constant 9.99999997E-7 : f32
    %12 = vector.broadcast %cst : f32 to vector<8x8x64xf32>
    %13 = arith.addf %11, %12 : vector<8x8x64xf32>
    %14 = arith.mulf %13, %13 : vector<8x8x64xf32>
    %cst_8 = arith.constant 1.000000e+00 : f32
    %15 = vector.broadcast %cst_8 : f32 to vector<64x1xf32>
    %16 = vector.shape_cast %14 : vector<8x8x64xf32> to vector<64x64xf32>
    %cst_9 = arith.constant dense<0.000000e+00> : vector<64x1xf32>
    %17 = tpu.matmul %16, %15, %cst_9 {dimension_numbers = #tpu.dot_dimension_numbers<[1], [0], [0], [1], [0, 0, 1, 1], [], []>} : vector<64x64xf32>, vector<64x1xf32>, vector<64x1xf32> -> vector<64x1xf32>
    %18 = math.sqrt %17 : vector<64x1xf32>
    %19 = vector.shape_cast %18 : vector<64x1xf32> to vector<8x8x1xf32>
    %cst_10 = arith.constant 0.000000e+00 : f32
    %20 = vector.broadcast %cst_10 : f32 to vector<8x8x1xf32>
    %21 = arith.subf %20, %19 : vector<8x8x1xf32>
    %22 = math.exp %21 : vector<8x8x1xf32>
    %cst_11 = arith.constant 1.000000e-03 : f32
    %23 = vector.broadcast %cst_11 : f32 to vector<8x8x1xf32>
    %24 = arith.cmpf ole, %22, %23 : vector<8x8x1xf32>
    %cst_12 = arith.constant 0.000000e+00 : f32
    %25 = vector.broadcast %cst_12 : f32 to vector<8x8x1xf32>
    %26 = arith.select %24, %25, %22 : vector<8x8x1xi1>, vector<8x8x1xf32>
    %27 = tpu.iota {dimensions = array<i32: 0>} : vector<8x1x1xi32>
    %28 = vector.broadcast %4 : i32 to vector<8x1x1xi32>
    %29 = arith.addi %27, %28 : vector<8x1x1xi32>
    %c0_13 = arith.constant 0 : index
    %c0_14 = arith.constant 0 : index
    %30 = vector.load %arg3[%c0_13, %c0_14] : memref<8x1xi32, #tpu.memory_space<vmem>>, vector<8x1xi32>
    %31 = vector.shape_cast %30 : vector<8x1xi32> to vector<1x8x1xi32>
    %32 = vector.broadcast %29 : vector<8x1x1xi32> to vector<8x8x1xi32>
    %33 = vector.broadcast %31 : vector<1x8x1xi32> to vector<8x8x1xi32>
    %34 = arith.cmpi slt, %32, %33 : vector<8x8x1xi32>
    %35 = arith.extui %34 : vector<8x8x1xi1> to vector<8x8x1xi32>
    %36 = arith.sitofp %35 : vector<8x8x1xi32> to vector<8x8x1xf32>
    %37 = arith.mulf %26, %36 : vector<8x8x1xf32>
    %c0_15 = arith.constant 0 : index
    %c0_16 = arith.constant 0 : index
    %38 = vector.load %arg18[%c0_15, %c0_16] : memref<8x1xf32, #tpu.memory_space<vmem>>, vector<8x1xf32>
    %cst_17 = arith.constant dense<0.000000e+00> : vector<8x1xf32>
    %39 = vector.multi_reduction <add>, %37, %cst_17 [0] : vector<8x8x1xf32> to vector<8x1xf32>
    %40 = arith.addf %38, %39 : vector<8x1xf32>
    %c0_18 = arith.constant 0 : index
    %c0_19 = arith.constant 0 : index
    %41 = vector.load %arg18[%c0_18, %c0_19] : memref<8x1xf32, #tpu.memory_space<vmem>>, vector<8x1xf32>
    tpu.vector_store %arg18[%c0_18, %c0_19], %40 {strides = array<i32>} : memref<8x1xf32, #tpu.memory_space<vmem>>, vector<8x1xf32>,
    %c0_20 = arith.constant 0 : index
    %c0_21 = arith.constant 0 : index
    %42 = vector.load %arg19[%c0_20, %c0_21] : memref<8x64xf32, #tpu.memory_space<vmem>>, vector<8x64xf32>
    %43 = vector.broadcast %37 : vector<8x8x1xf32> to vector<8x8x64xf32>
    %44 = arith.mulf %43, %7 : vector<8x8x64xf32>
    %cst_22 = arith.constant dense<0.000000e+00> : vector<8x64xf32>
    %45 = vector.multi_reduction <add>, %44, %cst_22 [0] : vector<8x8x64xf32> to vector<8x64xf32>
    %46 = arith.addf %42, %45 : vector<8x64xf32>
    %c0_23 = arith.constant 0 : index
    %c0_24 = arith.constant 0 : index
    %47 = vector.load %arg19[%c0_23, %c0_24] : memref<8x64xf32, #tpu.memory_space<vmem>>, vector<8x64xf32>
    tpu.vector_store %arg19[%c0_23, %c0_24], %46 {strides = array<i32>} : memref<8x64xf32, #tpu.memory_space<vmem>>, vector<8x64xf32>,
    %c0_25 = arith.constant 0 : index
    %c0_26 = arith.constant 0 : index
    %48 = vector.load %arg20[%c0_25, %c0_26] : memref<8x64xf32, #tpu.memory_space<vmem>>, vector<8x64xf32>
    %49 = vector.broadcast %36 : vector<8x8x1xf32> to vector<8x8x64xf32>
    %50 = arith.mulf %49, %7 : vector<8x8x64xf32>
    %cst_27 = arith.constant dense<0.000000e+00> : vector<8x64xf32>
    %51 = vector.multi_reduction <add>, %50, %cst_27 [0] : vector<8x8x64xf32> to vector<8x64xf32>
    %52 = arith.addf %48, %51 : vector<8x64xf32>
    %c0_28 = arith.constant 0 : index
    %c0_29 = arith.constant 0 : index
    %53 = vector.load %arg20[%c0_28, %c0_29] : memref<8x64xf32, #tpu.memory_space<vmem>>, vector<8x64xf32>
    tpu.vector_store %arg20[%c0_28, %c0_29], %52 {strides = array<i32>} : memref<8x64xf32, #tpu.memory_space<vmem>>, vector<8x64xf32>,
    %c2_i32 = arith.constant 2 : i32
    %54 = arith.cmpi eq, %arg1, %c2_i32 : i32
    %55 = arith.extui %54 : i1 to i32
    %c0_i32_30 = arith.constant 0 : i32
    %56 = arith.cmpi ne, %55, %c0_i32_30 : i32
    scf.if %56 {
      %c0_31 = arith.constant 0 : index
      %c0_32 = arith.constant 0 : index
      %57 = vector.load %arg18[%c0_31, %c0_32] : memref<8x1xf32, #tpu.memory_space<vmem>>, vector<8x1xf32>
      %cst_33 = arith.constant 0.000000e+00 : f32
      %58 = vector.broadcast %cst_33 : f32 to vector<8x1xf32>
      %59 = arith.cmpf ogt, %57, %58 : vector<8x1xf32>
      %cst_34 = arith.constant 1.000000e+00 : f32
      %60 = vector.broadcast %cst_34 : f32 to vector<8x1xf32>
      %61 = arith.select %59, %57, %60 : vector<8x1xi1>, vector<8x1xf32>
      %62 = tpu.reciprocal %61 {approx = true} : vector<8x1xf32> -> vector<8x1xf32>
      %c0_35 = arith.constant 0 : index
      %c0_36 = arith.constant 0 : index
      %63 = vector.load %arg3[%c0_35, %c0_36] : memref<8x1xi32, #tpu.memory_space<vmem>>, vector<8x1xi32>
      %64 = arith.sitofp %63 : vector<8x1xi32> to vector<8x1xf32>
      %cst_37 = arith.constant 1.000000e+00 : f32
      %65 = vector.broadcast %cst_37 : f32 to vector<8x1xf32>
      %66 = arith.maximumf %64, %65 : vector<8x1xf32>
      %67 = tpu.reciprocal %66 {approx = true} : vector<8x1xf32> -> vector<8x1xf32>
      %c0_38 = arith.constant 0 : index
      %c0_39 = arith.constant 0 : index
      %68 = vector.load %arg19[%c0_38, %c0_39] : memref<8x64xf32, #tpu.memory_space<vmem>>, vector<8x64xf32>
      %69 = vector.broadcast %62 : vector<8x1xf32> to vector<8x64xf32>
      %70 = arith.mulf %68, %69 : vector<8x64xf32>
      %c0_40 = arith.constant 0 : index
      %c0_41 = arith.constant 0 : index
      %71 = vector.load %arg20[%c0_40, %c0_41] : memref<8x64xf32, #tpu.memory_space<vmem>>, vector<8x64xf32>
      %72 = vector.broadcast %67 : vector<8x1xf32> to vector<8x64xf32>
      %73 = arith.mulf %71, %72 : vector<8x64xf32>
      %74 = vector.shape_cast %59 : vector<8x1xi1> to vector<8x1xi1>
      %75 = vector.broadcast %74 : vector<8x1xi1> to vector<8x64xi1>
      %76 = arith.select %75, %70, %73 : vector<8x64xi1>, vector<8x64xf32>
      %c0_42 = arith.constant 0 : index
      %c0_43 = arith.constant 0 : index
      %77 = vector.load %arg5[%c0_42, %c0_43] : memref<8x32xf32, #tpu.memory_space<vmem>>, vector<8x32xf32>
      %c0_44 = arith.constant 0 : index
      %c0_45 = arith.constant 0 : index
      %78 = vector.load %arg4[%c0_44, %c0_45] : memref<8x16xf32, #tpu.memory_space<vmem>>, vector<8x16xf32>
      %79 = tpu.concatenate %77, %78, %76 in 1 : vector<8x32xf32>, vector<8x16xf32>, vector<8x64xf32> -> vector<8x112xf32>
      %c0_46 = arith.constant 0 : index
      %c0_47 = arith.constant 0 : index
      %80 = vector.load %arg9[%c0_46, %c0_47] : memref<112x64xf32, #tpu.memory_space<vmem>>, vector<112x64xf32>
      %cst_48 = arith.constant dense<0.000000e+00> : vector<8x64xf32>
      %81 = tpu.matmul %79, %80, %cst_48 {dimension_numbers = #tpu.dot_dimension_numbers<[1], [0], [0], [1], [0, 0, 1, 1], [], []>} : vector<8x112xf32>, vector<112x64xf32>, vector<8x64xf32> -> vector<8x64xf32>
      %c0_49 = arith.constant 0 : index
      %c0_50 = arith.constant 0 : index
      %82 = vector.load %arg10[%c0_49, %c0_50] : memref<1x64xf32, #tpu.memory_space<vmem>>, vector<1x64xf32>
      %83 = vector.broadcast %82 : vector<1x64xf32> to vector<8x64xf32>
      %84 = arith.addf %81, %83 : vector<8x64xf32>
      %cst_51 = arith.constant 0.000000e+00 : f32
      %85 = vector.broadcast %cst_51 : f32 to vector<8x64xf32>
      %86 = arith.maximumf %84, %85 : vector<8x64xf32>
      %c0_52 = arith.constant 0 : index
      %c0_53 = arith.constant 0 : index
      %87 = vector.load %arg11[%c0_52, %c0_53] : memref<64x32xf32, #tpu.memory_space<vmem>>, vector<64x32xf32>
      %cst_54 = arith.constant dense<0.000000e+00> : vector<8x32xf32>
      %88 = tpu.matmul %86, %87, %cst_54 {dimension_numbers = #tpu.dot_dimension_numbers<[1], [0], [0], [1], [0, 0, 1, 1], [], []>} : vector<8x64xf32>, vector<64x32xf32>, vector<8x32xf32> -> vector<8x32xf32>
      %c0_55 = arith.constant 0 : index
      %c0_56 = arith.constant 0 : index
      %89 = vector.load %arg12[%c0_55, %c0_56] : memref<1x32xf32, #tpu.memory_space<vmem>>, vector<1x32xf32>
      %90 = vector.broadcast %89 : vector<1x32xf32> to vector<8x32xf32>
      %91 = arith.addf %88, %90 : vector<8x32xf32>
      %cst_57 = arith.constant 0.000000e+00 : f32
      %92 = vector.broadcast %cst_57 : f32 to vector<8x32xf32>
      %93 = arith.maximumf %91, %92 : vector<8x32xf32>
      %c0_58 = arith.constant 0 : index
      %c0_59 = arith.constant 0 : index
      %94 = vector.load %arg13[%c0_58, %c0_59] : memref<32x2xf32, #tpu.memory_space<vmem>>, vector<32x2xf32>
      %cst_60 = arith.constant dense<0.000000e+00> : vector<8x2xf32>
      %95 = tpu.matmul %93, %94, %cst_60 {dimension_numbers = #tpu.dot_dimension_numbers<[1], [0], [0], [1], [0, 0, 1, 1], [], []>} : vector<8x32xf32>, vector<32x2xf32>, vector<8x2xf32> -> vector<8x2xf32>
      %c0_61 = arith.constant 0 : index
      %c0_62 = arith.constant 0 : index
      %96 = vector.load %arg14[%c0_61, %c0_62] : memref<1x2xf32, #tpu.memory_space<vmem>>, vector<1x2xf32>
      %97 = vector.broadcast %96 : vector<1x2xf32> to vector<8x2xf32>
      %98 = arith.addf %95, %97 : vector<8x2xf32>
      %99 = math.absf %98 : vector<8x2xf32>
      %cst_63 = arith.constant 0.000000e+00 : f32
      %100 = vector.broadcast %cst_63 : f32 to vector<8x2xf32>
      %101 = arith.subf %100, %99 : vector<8x2xf32>
      %102 = math.exp %101 : vector<8x2xf32>
      %cst_64 = arith.constant 0.000000e+00 : f32
      %103 = vector.broadcast %cst_64 : f32 to vector<8x2xf32>
      %104 = arith.cmpf oge, %98, %103 : vector<8x2xf32>
      %cst_65 = arith.constant 1.000000e+00 : f32
      %105 = vector.broadcast %cst_65 : f32 to vector<8x2xf32>
      %106 = arith.addf %105, %102 : vector<8x2xf32>
      %cst_66 = arith.constant 1.000000e+00 : f32
      %107 = vector.broadcast %cst_66 : f32 to vector<8x2xf32>
      %108 = arith.divf %107, %106 : vector<8x2xf32>
      %cst_67 = arith.constant 1.000000e+00 : f32
      %109 = vector.broadcast %cst_67 : f32 to vector<8x2xf32>
      %110 = arith.addf %109, %102 : vector<8x2xf32>
      %111 = arith.divf %102, %110 : vector<8x2xf32>
      %112 = arith.select %104, %108, %111 : vector<8x2xi1>, vector<8x2xf32>
      %c0_68 = arith.constant 0 : index
      %c0_69 = arith.constant 0 : index
      %113 = vector.load %arg15[%c0_68, %c0_69] : memref<8x2xf32, #tpu.memory_space<vmem>>, vector<8x2xf32>
      tpu.vector_store %arg15[%c0_68, %c0_69], %112 {strides = array<i32>} : memref<8x2xf32, #tpu.memory_space<vmem>>, vector<8x2xf32>,
    } else {
    }
    return
  }
  func.func @transform_0(%arg0: i32, %arg1: i32, %arg2: memref<16x24xi32, #tpu.memory_space<smem>>) -> (i32, i32) {
    %c0_i32 = arith.constant 0 : i32
    %c0_i32_0 = arith.constant 0 : i32
    return %arg0, %c0_i32 : i32, i32
  }
  func.func @transform_1(%arg0: i32, %arg1: i32, %arg2: memref<16x24xi32, #tpu.memory_space<smem>>) -> (i32, i32) {
    %c0_i32 = arith.constant 0 : i32
    %c0_i32_0 = arith.constant 0 : i32
    return %arg0, %c0_i32 : i32, i32
  }
  func.func @transform_2(%arg0: i32, %arg1: i32, %arg2: memref<16x24xi32, #tpu.memory_space<smem>>) -> (i32, i32) {
    %c0_i32 = arith.constant 0 : i32
    %c0_i32_0 = arith.constant 0 : i32
    return %arg0, %c0_i32 : i32, i32
  }
  func.func @transform_3(%arg0: i32, %arg1: i32, %arg2: memref<16x24xi32, #tpu.memory_space<smem>>) -> (i32, i32) {
    %c0_i32 = arith.constant 0 : i32
    %c0_i32_0 = arith.constant 0 : i32
    %c0_i32_1 = arith.constant 0 : i32
    return %c0_i32, %c0_i32_0 : i32, i32
  }
  func.func @transform_4(%arg0: i32, %arg1: i32, %arg2: memref<16x24xi32, #tpu.memory_space<smem>>) -> (i32, i32) {
    %c0_i32 = arith.constant 0 : i32
    %c0_i32_0 = arith.constant 0 : i32
    %c0_i32_1 = arith.constant 0 : i32
    return %c0_i32, %c0_i32_0 : i32, i32
  }
  func.func @transform_5(%arg0: i32, %arg1: i32, %arg2: memref<16x24xi32, #tpu.memory_space<smem>>) -> (i32, i32) {
    %c0_i32 = arith.constant 0 : i32
    %c0_i32_0 = arith.constant 0 : i32
    %c0_i32_1 = arith.constant 0 : i32
    return %c0_i32, %c0_i32_0 : i32, i32
  }
  func.func @transform_6(%arg0: i32, %arg1: i32, %arg2: memref<16x24xi32, #tpu.memory_space<smem>>) -> (i32, i32) {
    %c0_i32 = arith.constant 0 : i32
    %c0_i32_0 = arith.constant 0 : i32
    %c0_i32_1 = arith.constant 0 : i32
    return %c0_i32, %c0_i32_0 : i32, i32
  }
  func.func @transform_7(%arg0: i32, %arg1: i32, %arg2: memref<16x24xi32, #tpu.memory_space<smem>>) -> (i32, i32) {
    %c0_i32 = arith.constant 0 : i32
    %c0_i32_0 = arith.constant 0 : i32
    %c0_i32_1 = arith.constant 0 : i32
    return %c0_i32, %c0_i32_0 : i32, i32
  }
  func.func @transform_8(%arg0: i32, %arg1: i32, %arg2: memref<16x24xi32, #tpu.memory_space<smem>>) -> (i32, i32) {
    %c0_i32 = arith.constant 0 : i32
    %c0_i32_0 = arith.constant 0 : i32
    %c0_i32_1 = arith.constant 0 : i32
    return %c0_i32, %c0_i32_0 : i32, i32
  }
  func.func @transform_9(%arg0: i32, %arg1: i32, %arg2: memref<16x24xi32, #tpu.memory_space<smem>>) -> (i32, i32) {
    %c0_i32 = arith.constant 0 : i32
    %c0_i32_0 = arith.constant 0 : i32
    %c0_i32_1 = arith.constant 0 : i32
    return %c0_i32, %c0_i32_0 : i32, i32
  }
  func.func @transform_10(%arg0: i32, %arg1: i32, %arg2: memref<16x24xi32, #tpu.memory_space<smem>>) -> (i32, i32) {
    %c0_i32 = arith.constant 0 : i32
    %c0_i32_0 = arith.constant 0 : i32
    %c0_i32_1 = arith.constant 0 : i32
    return %c0_i32, %c0_i32_0 : i32, i32
  }
  func.func @transform_11(%arg0: i32, %arg1: i32, %arg2: memref<16x24xi32, #tpu.memory_space<smem>>) -> (i32, i32) {
    %c0_i32 = arith.constant 0 : i32
    %c0_i32_0 = arith.constant 0 : i32
    %c0_i32_1 = arith.constant 0 : i32
    return %c0_i32, %c0_i32_0 : i32, i32
  }
  func.func @transform_12(%arg0: i32, %arg1: i32, %arg2: memref<16x24xi32, #tpu.memory_space<smem>>) -> (i32, i32) {
    %c0_i32 = arith.constant 0 : i32
    %c0_i32_0 = arith.constant 0 : i32
    return %arg0, %c0_i32 : i32, i32
  }
}

</mosaic_0001>

<llo_original>
// kernel: graphconsis_forward.2
$region0: #{graphconsis_forward.2}
  #allocation0 [shape = 'u32[]', space=smem, size = 0x4, offset = 0x4, fixed_abs, tag = 'smem constant byte address 0x4 - core index']
  #allocation1 [shape = 'u32[144,128]{1,0:T(1,128)}', space=vmem, size = 0x12000, scoped, tag = 'internal scratch']
  %s0 = inlined_call_operand.vmem [shape: f32[16,32], index: 0, kind: input, shape index: {}]
  %s1 = inlined_call_operand.vmem [shape: f32[32,64], index: 1, kind: input, shape index: {}]
  %s2 = inlined_call_operand.vmem [shape: f32[1,64], index: 2, kind: input, shape index: {}]
  %s3 = inlined_call_operand.vmem [shape: f32[16,64], index: 3, kind: output, shape index: {}]
  %s4 = sld [smem:[#allocation0]]
  $region45: #{graphconsis_forward.2} parent=0
    _
  %s6 = ssub.s32 1, %s4
  %s7 = scalar_select 0, %s6, %s4
  loop: start=0, step=1, limit=4
  $region2: #{graphconsis_forward.2} parent=0 // loop_pre_header
    _
  $region3: #{graphconsis_forward.2} parent=0 // loop_header
    %s9 = sphi 0, %s13
    %p10 = scmp.ge.s32.totalorder %s9, 4
    %s19 = sphi 0, %s21
    %s22 = sphi 0, %s19
    %s23 = sphi 0, %s22
    %s39 = sphi 0, %s23
    %s43 = sphi 0, %s43
    %s45 = sphi 0, %s43
    %s46 = sphi 0, %s45
    %s60 = sphi 0, %s46
    %s64 = sphi 0, %s64
    %s66 = sphi 0, %s64
    %s67 = sphi 0, %s66
    %s81 = sphi 0, %s67
    %s87 = sphi 0, %s89
    %s90 = sphi 0, %s87
    %s91 = sphi 0, %s90
    %s107 = sphi 0, %s91
  $region4: #{graphconsis_forward.2} parent=0 // loop_header_branch
    %12 = sbr.rel (%p10) target = $region8
  $region5: #{graphconsis_forward.2} parent=0 // loop_body
    %s14 = ssub.s32 %s9, 1
    %s15 = ssub.s32 %s9, 2
    %s16 = sadd.s32 %s9, 1
    %s17 = ssub.s32 %s9, %s16
    %p18 = scmp.eq.s32.totalorder %s17, 0
    %s20 = sadd.s32 %s19, 1
    %s21 = scalar_select %p18, %s19, %s20
    %p24 = pneg %p18
    %p25 = scmp.eq.s32.totalorder %s9, 1
    %p26 = por %p24, %p25
    %p27 = scmp.ne.s32.totalorder %s19, %s22
    %p28 = scmp.eq.s32.totalorder %s9, 0
    %p29 = por %p27, %p28
    %p30 = scmp.ne.s32.totalorder %s19, %s22
    %p31 = scmp.eq.s32.totalorder %s14, 1
    %p32 = por %p30, %p31
    %p33 = scmp.ne.s32.totalorder %s22, %s23
    %p34 = scmp.eq.s32.totalorder %s14, 0
    %p35 = por %p33, %p34
    %p36 = scmp.ne.s32.totalorder %s22, %s23
    %p37 = scmp.eq.s32.totalorder %s15, 1
    %p38 = por %p36, %p37
    %p40 = scmp.ne.s32.totalorder %s23, %s39
    %p41 = scmp.eq.s32.totalorder %s15, 0
    %p42 = por %p40, %p41
    %s44 = sadd.s32 %s43, 1
    %p47 = scmp.eq.s32.totalorder %s9, 1
    %p48 = scmp.ne.s32.totalorder %s43, %s45
    %p49 = scmp.eq.s32.totalorder %s9, 0
    %p50 = por %p48, %p49
    %p51 = scmp.ne.s32.totalorder %s43, %s45
    %p52 = scmp.eq.s32.totalorder %s14, 1
    %p53 = por %p51, %p52
    %p54 = scmp.ne.s32.totalorder %s45, %s46
    %p55 = scmp.eq.s32.totalorder %s14, 0
    %p56 = por %p54, %p55
    %p57 = scmp.ne.s32.totalorder %s45, %s46
    %p58 = scmp.eq.s32.totalorder %s15, 1
    %p59 = por %p57, %p58
    %p61 = scmp.ne.s32.totalorder %s46, %s60
    %p62 = scmp.eq.s32.totalorder %s15, 0
    %p63 = por %p61, %p62
    %s65 = sadd.s32 %s64, 1
    %p68 = scmp.eq.s32.totalorder %s9, 1
    %p69 = scmp.ne.s32.totalorder %s64, %s66
    %p70 = scmp.eq.s32.totalorder %s9, 0
    %p71 = por %p69, %p70
    %p72 = scmp.ne.s32.totalorder %s64, %s66
    %p73 = scmp.eq.s32.totalorder %s14, 1
    %p74 = por %p72, %p73
    %p75 = scmp.ne.s32.totalorder %s66, %s67
    %p76 = scmp.eq.s32.totalorder %s14, 0
    %p77 = por %p75, %p76
    %p78 = scmp.ne.s32.totalorder %s66, %s67
    %p79 = scmp.eq.s32.totalorder %s15, 1
    %p80 = por %p78, %p79
    %p82 = scmp.ne.s32.totalorder %s67, %s81
    %p83 = scmp.eq.s32.totalorder %s15, 0
    %p84 = por %p82, %p83
    %s85 = ssub.s32 %s9, %s16
    %p86 = scmp.eq.s32.totalorder %s85, 0
    %s88 = sadd.s32 %s87, 1
    %s89 = scalar_select %p86, %s87, %s88
    %p92 = pneg %p86
    %p93 = scmp.eq.s32.totalorder %s9, 1
    %p94 = por %p92, %p93
    %p95 = scmp.ne.s32.totalorder %s87, %s90
    %p96 = scmp.eq.s32.totalorder %s9, 0
    %p97 = por %p95, %p96
    %p98 = scmp.ne.s32.totalorder %s87, %s90
    %p99 = scmp.eq.s32.totalorder %s14, 1
    %p100 = por %p98, %p99
    %p101 = scmp.ne.s32.totalorder %s90, %s91
    %p102 = scmp.eq.s32.totalorder %s14, 0
    %p103 = por %p101, %p102
    %p104 = scmp.ne.s32.totalorder %s90, %s91
    %p105 = scmp.eq.s32.totalorder %s15, 1
    %p106 = por %p104, %p105
    %p108 = scmp.ne.s32.totalorder %s91, %s107
    %p109 = scmp.eq.s32.totalorder %s15, 0
    %p110 = por %p108, %p109
    %p111 = scmp.le.s32.totalorder 1, %s9
    %p112 = scmp.lt.s32.totalorder %s9, 3
    %p113 = pnand %p111, %p112
    %p114 = pneg %p113
    // Predicated region
    $region9: #{graphconsis_forward.2} parent=5 // pred_check
      _
    $region10: #{graphconsis_forward.2} parent=5 // pred_check_branch
      %116 = sbr.rel (%p113) target = $region12
    $region11: #{graphconsis_forward.2} parent=5 // pred_region
      %s117 = ssub.s32 %s9, 1
      // Predicated region
      $region13: #{graphconsis_forward.2} parent=11 // pred_check
        %p118 = pneg %p56
      $region14: #{graphconsis_forward.2} parent=11 // pred_check_branch
        %120 = sbr.rel (%p118) target = $region16
      $region15: #{graphconsis_forward.2} parent=11 // pred_region
        _
      $region16: #{graphconsis_forward.2} parent=11 // pred_fallthru
        _
      // Predicated region
      $region17: #{graphconsis_forward.2} parent=11 // pred_check
        %p121 = pneg %p77
      $region18: #{graphconsis_forward.2} parent=11 // pred_check_branch
        %123 = sbr.rel (%p121) target = $region20
      $region19: #{graphconsis_forward.2} parent=11 // pred_region
        _
      $region20: #{graphconsis_forward.2} parent=11 // pred_fallthru
        _
    $region12: #{graphconsis_forward.2} parent=5 // pred_fallthru
      _
    %p124 = scmp.lt.s32.totalorder %s9, 2
    // Predicated region
    $region21: #{graphconsis_forward.2} parent=5 // pred_check
      %p125 = pneg %p124
    $region22: #{graphconsis_forward.2} parent=5 // pred_check_branch
      %127 = sbr.rel (%p125) target = $region24
    $region23: #{graphconsis_forward.2} parent=5 // pred_region
      // Predicated region
      $region25: #{graphconsis_forward.2} parent=23 // pred_check
        %p128 = pneg %p29
      $region26: #{graphconsis_forward.2} parent=23 // pred_check_branch
        %130 = sbr.rel (%p128) target = $region28
      $region27: #{graphconsis_forward.2} parent=23 // pred_region
        %p131 = scmp.lt.s32.totalorder %s9, 1
        %s132 = scalar_select %p131, %s9, 1
        %s133 = smul.addr %s132, 8
        %s134 = scalar_lea.vmem %s0, %s133
      $region28: #{graphconsis_forward.2} parent=23 // pred_fallthru
        _
    $region24: #{graphconsis_forward.2} parent=5 // pred_fallthru
      _
    %p135 = scmp.le.s32.totalorder 1, %s9
    %p136 = scmp.lt.s32.totalorder %s9, 3
    %p137 = pnand %p135, %p136
    %p138 = pneg %p137
    // Predicated region
    $region29: #{graphconsis_forward.2} parent=5 // pred_check
      _
    $region30: #{graphconsis_forward.2} parent=5 // pred_check_branch
      %140 = sbr.rel (%p137) target = $region32
    $region31: #{graphconsis_forward.2} parent=5 // pred_region
      %s141 = ssub.s32 %s9, 1
      %p142 = scmp.lt.s32.totalorder %s14, 1
      %s143 = scalar_select %p142, %s14, 1
      %s144 = smul.addr %s143, 8
      %s145 = scalar_lea.vmem %s0, %s144
      %p146 = pneg %p35
      %p147 = pneg %p32
      %p148 = pneg %p56
      %p149 = pneg %p53
      %p150 = pneg %p77
      %p151 = pneg %p74
      %p152 = pneg %p103
      %p153 = pneg %p100
      %p154 = scmp.lt.s32.totalorder %s14, 1
      %s155 = scalar_select %p154, %s14, 1
      %s156 = smul.addr %s155, 8
      %s157 = scalar_lea.vmem %s3, %s156
      %p158 = scmp.lt.s32.totalorder %s14, 1
      %s159 = scalar_select %p158, %s14, 1
      %s160 = smul.addr %s159, 8
      %s161 = scalar_lea.vmem %s0, %s160
      %p162 = scmp.lt.s32.totalorder %s14, 1
      %s163 = scalar_select %p162, %s14, 1
      %s164 = smul.addr %s163, 8
      %s165 = scalar_lea.vmem %s3, %s164
      %v166 = vld [vmem:[%s161] sm:$0xff]
      %v167 = vld [vmem:[%s1] sm:$0xff]
      %v168 = vld [vmem:[%s1 + $0x8] sm:$0xff]
      %v169 = vld [vmem:[%s1 + $0x10] sm:$0xff]
      %v170 = vld [vmem:[%s1 + $0x18] sm:$0xff]
      %v171 = vld [vmem:[%s2] sm:$0x1]
      %v173 = vlaneseq
      %v174 = vshrl.u32 %v173, 7
      %v175 = vsub.s32 0, %v174
      %v176 = vrot.slane %v171, %v175
      %vm178 = vcmask 261120
      %v180 = vsel %vm178, %v166, 0
      %182 = vmatprep.subr.mxu0 0.0
      %183 = vmatpush1.msra.mxu0 0.0
      %184 = vmatprep.subr.mxu0 0.0
      %185 = vmatpush1.msra.mxu0 0.0
      %186 = vmatprep.subr.mxu0 0.0
      %187 = vmatpush1.msra.mxu0 0.0
      %188 = vmatprep.subr.mxu0 0.0
      %189 = vmatpush1.msra.mxu0 0.0
      %190 = vmatprep.subr.mxu0 0.0
      %191 = vmatpush1.msra.mxu0 0.0
      %192 = vmatprep.subr.mxu0 0.0
      %193 = vmatpush1.msra.mxu0 0.0
      %194 = vmatprep.subr.mxu0 0.0
      %195 = vmatpush1.msra.mxu0 0.0
      %196 = vmatprep.subr.mxu0 0.0
      %197 = vmatpush1.msra.mxu0 0.0
      %198 = vmatprep.subr.mxu0 0.0
      %199 = vmatpush1.msra.mxu0 0.0
      %200 = vmatprep.subr.mxu0 0.0
      %201 = vmatpush1.msra.mxu0 0.0
      %202 = vmatprep.subr.mxu0 0.0
      %203 = vmatpush1.msra.mxu0 0.0
      %204 = vmatprep.subr.mxu0 0.0
      %205 = vmatpush1.msra.mxu0 0.0
      %206 = vmatprep.subr.mxu0 0.0
      %207 = vmatpush1.msra.mxu0 %v170
      %208 = vmatprep.subr.mxu0 0.0
      %209 = vmatpush1.msra.mxu0 %v169
      %210 = vmatprep.subr.mxu0 0.0
      %211 = vmatpush1.msra.mxu0 %v168
      %212 = vmatprep.subr.mxu0 0.0
      %213 = vmatpush1.msra.mxu0 %v167
      %214 = vmatprep.subr.mxu0 0.0
      %215 = vmatpush2.msra.mxu0 0.0
      %216 = vmatprep.subr.mxu0 0.0
      %217 = vmatpush2.msra.mxu0 0.0
      %218 = vmatprep.subr.mxu0 0.0
      %219 = vmatpush2.msra.mxu0 0.0
      %220 = vmatprep.subr.mxu0 0.0
      %221 = vmatpush2.msra.mxu0 0.0
      %222 = vmatprep.subr.mxu0 0.0
      %223 = vmatpush2.msra.mxu0 0.0
      %224 = vmatprep.subr.mxu0 0.0
      %225 = vmatpush2.msra.mxu0 0.0
      %226 = vmatprep.subr.mxu0 0.0
      %227 = vmatpush2.msra.mxu0 0.0
      %228 = vmatprep.subr.mxu0 0.0
      %229 = vmatpush2.msra.mxu0 0.0
      %230 = vmatprep.subr.mxu0 0.0
      %231 = vmatpush2.msra.mxu0 0.0
      %232 = vmatprep.subr.mxu0 0.0
      %233 = vmatpush2.msra.mxu0 0.0
      %234 = vmatprep.subr.mxu0 0.0
      %235 = vmatpush2.msra.mxu0 0.0
      %236 = vmatprep.subr.mxu0 0.0
      %237 = vmatpush2.msra.mxu0 0.0
      %238 = vmatprep.subr.mxu0 0.0
      %239 = vmatpush2.msra.mxu0 0.0
      %240 = vmatprep.subr.mxu0 0.0
      %241 = vmatpush2.msra.mxu0 0.0
      %242 = vmatprep.subr.mxu0 0.0
      %243 = vmatpush2.msra.mxu0 0.0
      %244 = vmatprep.subr.mxu0 0.0
      %245 = vmatpush2.msra.mxu0 0.0
      %246 = vmatprep.mubr.f32.mxu0 0.0
      %247 = vmatmul.mubr.f32.gmra.mxu0 %v180
      %v248 = vpop.f32.mrf.mxu0
      %v249 = vadd.f32 %v176, %v248
      %v250 = vpop.f32.mrf.mxu0
      %251 = vdwg.mxu0
      %vm252 = vcmask 523264
      %253 = vst.msk [vmem:[%s165] sm:$0xff] %vm252, %v249
      %p254 = scmp.lt.s32.totalorder %s14, 1
      %s255 = scalar_select %p254, %s14, 1
      %s256 = smul.addr %s255, 8
      %s257 = scalar_lea.vmem %s3, %s256
      // Predicated region
      $region33: #{graphconsis_forward.2} parent=31 // pred_check
        %p258 = pneg %p100
      $region34: #{graphconsis_forward.2} parent=31 // pred_check_branch
        %260 = sbr.rel (%p258) target = $region36
      $region35: #{graphconsis_forward.2} parent=31 // pred_region
        _
      $region36: #{graphconsis_forward.2} parent=31 // pred_fallthru
        _
    $region32: #{graphconsis_forward.2} parent=5 // pred_fallthru
      _
    %p261 = scmp.le.s32.totalorder 2, %s9
    // Predicated region
    $region37: #{graphconsis_forward.2} parent=5 // pred_check
      %p262 = pneg %p261
    $region38: #{graphconsis_forward.2} parent=5 // pred_check_branch
      %264 = sbr.rel (%p262) target = $region40
    $region39: #{graphconsis_forward.2} parent=5 // pred_region
      %s265 = ssub.s32 %s9, 2
      // Predicated region
      $region41: #{graphconsis_forward.2} parent=39 // pred_check
        %p266 = pneg %p106
      $region42: #{graphconsis_forward.2} parent=39 // pred_check_branch
        %268 = sbr.rel (%p266) target = $region44
      $region43: #{graphconsis_forward.2} parent=39 // pred_region
        %p269 = scmp.lt.s32.totalorder %s15, 1
        %s270 = scalar_select %p269, %s15, 1
        %s271 = smul.addr %s270, 8
        %s272 = scalar_lea.vmem %s3, %s271
      $region44: #{graphconsis_forward.2} parent=39 // pred_fallthru
        _
    $region40: #{graphconsis_forward.2} parent=5 // pred_fallthru
      _
  $region6: #{graphconsis_forward.2} parent=0 // loop_footer
    %s13 = sadd.s32 1, %s9
  $region7: #{graphconsis_forward.2} parent=0 // loop_footer_branch
    %8 = sbr.rel target = $region3
  $region8: #{graphconsis_forward.2} parent=0 // loop_exit
    _

// kernel: graphconsis_forward.3
$region0: #{graphconsis_forward.3}
  #allocation0 [shape = 'u32[]', space=smem, size = 0x4, offset = 0x4, fixed_abs, tag = 'smem constant byte address 0x4 - core index']
  #allocation1 [shape = 'u32[144,128]{1,0:T(1,128)}', space=vmem, size = 0x12000, scoped, tag = 'internal scratch']
  #allocation2 [shape = 'f32[64,64]{1,0:T(8,128)}', space=vmem, size = 0x8000, scoped, tag = 'scratch operand']
  #allocation3 [shape = 'f32[8,64]{1,0:T(8,128)}', space=vmem, size = 0x1000, scoped, tag = 'scratch operand']
  #allocation4 [shape = 'f32[8,1]{1,0:T(8,128)}', space=vmem, size = 0x1000, scoped, tag = 'scratch operand']
  #allocation5 [shape = 'f32[8,64]{1,0:T(8,128)}', space=vmem, size = 0x1000, scoped, tag = 'scratch operand']
  #allocation6 [shape = 'f32[8,64]{1,0:T(8,128)}', space=vmem, size = 0x1000, scoped, tag = 'scratch operand']
  #allocation7 [shape = 's32[1]{0}', space=sflag, size = 0x4, scoped, tag = 'scoped memory for graphconsis_forward.3']
  #allocation8 [shape = 'u8[8192]{0}', space=smem, size = 0x2000, scoped, tag = 'prefetched SMEM operand 0']
  %s0 = inlined_call_operand.vmem [shape: s32[16,24], index: 0, kind: input, shape index: {}]
  %s1 = inlined_call_operand.vmem [shape: s32[16,1], index: 1, kind: input, shape index: {}]
  %s2 = inlined_call_operand.vmem [shape: f32[16,16], index: 2, kind: input, shape index: {}]
  %s3 = inlined_call_operand.vmem [shape: f32[16,32], index: 3, kind: input, shape index: {}]
  %s4 = inlined_call_operand.vmem [shape: f32[16,64], index: 4, kind: input, shape index: {}]
  %s5 = inlined_call_operand.vmem [shape: f32[16,64], index: 5, kind: input, shape index: {}]
  %s6 = inlined_call_operand.vmem [shape: f32[1,64], index: 6, kind: input, shape index: {}]
  %s7 = inlined_call_operand.vmem [shape: f32[112,64], index: 7, kind: input, shape index: {}]
  %s8 = inlined_call_operand.vmem [shape: f32[1,64], index: 8, kind: input, shape index: {}]
  %s9 = inlined_call_operand.vmem [shape: f32[64,32], index: 9, kind: input, shape index: {}]
  %s10 = inlined_call_operand.vmem [shape: f32[1,32], index: 10, kind: input, shape index: {}]
  %s11 = inlined_call_operand.vmem [shape: f32[32,2], index: 11, kind: input, shape index: {}]
  %s12 = inlined_call_operand.vmem [shape: f32[1,2], index: 12, kind: input, shape index: {}]
  %s13 = inlined_call_operand.vmem [shape: f32[16,2], index: 13, kind: output, shape index: {}]
  %s14 = sld [smem:[#allocation0]]
  $region103: #{graphconsis_forward.3} parent=0
    _
  %s16 = ssub.s32 1, %s14
  %s17 = scalar_select 0, %s16, %s14
  %s18 = sshll.u32 %s0, 4
  %s19 = int_to_ptr.vmem [resolvable:$true] %s18
  %21 = dma.vmem_to_smem %s19, 256, [#allocation8], [#allocation7]
  %22 = dma.done [#allocation7], 256
  %23 = sfence
  loop: start=0, step=1, limit=8
  $region2: #{graphconsis_forward.3} parent=0 // loop_pre_header
    _
  $region3: #{graphconsis_forward.3} parent=0 // loop_header
    %s25 = sphi 0, %s29
    %p26 = scmp.ge.s32.totalorder %s25, 8
    %s32 = sphi 0, %s44
    %s33 = sphi 0, %s40
    %s34 = sphi 0, %s32
    %s35 = sphi 0, %s33
    %s36 = sphi 0, %s34
    %s37 = sphi 0, %s35
    %s47 = sphi 0, %s49
    %s50 = sphi 0, %s47
    %s51 = sphi 0, %s50
    %s67 = sphi 0, %s51
    %s73 = sphi 0, %s75
    %s76 = sphi 0, %s73
    %s77 = sphi 0, %s76
    %s93 = sphi 0, %s77
    %s99 = sphi 0, %s101
    %s102 = sphi 0, %s99
    %s103 = sphi 0, %s102
    %s119 = sphi 0, %s103
    %s123 = sphi 0, %s123
    %s125 = sphi 0, %s123
    %s126 = sphi 0, %s125
    %s140 = sphi 0, %s126
    %s144 = sphi 0, %s144
    %s146 = sphi 0, %s144
    %s147 = sphi 0, %s146
    %s161 = sphi 0, %s147
    %s165 = sphi 0, %s165
    %s167 = sphi 0, %s165
    %s168 = sphi 0, %s167
    %s182 = sphi 0, %s168
    %s186 = sphi 0, %s186
    %s188 = sphi 0, %s186
    %s189 = sphi 0, %s188
    %s203 = sphi 0, %s189
    %s207 = sphi 0, %s207
    %s209 = sphi 0, %s207
    %s210 = sphi 0, %s209
    %s224 = sphi 0, %s210
    %s228 = sphi 0, %s228
    %s230 = sphi 0, %s228
    %s231 = sphi 0, %s230
    %s245 = sphi 0, %s231
    %s249 = sphi 0, %s249
    %s251 = sphi 0, %s249
    %s252 = sphi 0, %s251
    %s266 = sphi 0, %s252
    %s270 = sphi 0, %s270
    %s272 = sphi 0, %s270
    %s273 = sphi 0, %s272
    %s287 = sphi 0, %s273
    %s291 = sphi 0, %s291
    %s293 = sphi 0, %s291
    %s294 = sphi 0, %s293
    %s308 = sphi 0, %s294
    %s314 = sphi 0, %s316
    %s317 = sphi 0, %s314
    %s318 = sphi 0, %s317
    %s334 = sphi 0, %s318
  $region4: #{graphconsis_forward.3} parent=0 // loop_header_branch
    %28 = sbr.rel (%p26) target = $region8
  $region5: #{graphconsis_forward.3} parent=0 // loop_body
    %s30 = ssub.s32 %s25, 1
    %s31 = ssub.s32 %s25, 2
    %s38 = sadd.s32 1, %s33
    %p39 = scmp.ge.s32.totalorder %s38, 3
    %s40 = scalar_select %p39, 0, %s38
    %s41 = sadd.s32 1, %s32
    %s42 = scalar_select %p39, %s41, %s32
    %p43 = scmp.ge.s32.totalorder %s42, 2
    %s44 = scalar_select %p43, 0, %s42
    %s45 = ssub.s32 %s32, %s44
    %p46 = scmp.eq.s32.totalorder %s45, 0
    %s48 = sadd.s32 %s47, 1
    %s49 = scalar_select %p46, %s47, %s48
    %p52 = pneg %p46
    %p53 = scmp.eq.s32.totalorder %s25, 5
    %p54 = por %p52, %p53
    %p55 = scmp.ne.s32.totalorder %s47, %s50
    %p56 = scmp.eq.s32.totalorder %s25, 0
    %p57 = por %p55, %p56
    %p58 = scmp.ne.s32.totalorder %s47, %s50
    %p59 = scmp.eq.s32.totalorder %s30, 5
    %p60 = por %p58, %p59
    %p61 = scmp.ne.s32.totalorder %s50, %s51
    %p62 = scmp.eq.s32.totalorder %s30, 0
    %p63 = por %p61, %p62
    %p64 = scmp.ne.s32.totalorder %s50, %s51
    %p65 = scmp.eq.s32.totalorder %s31, 5
    %p66 = por %p64, %p65
    %p68 = scmp.ne.s32.totalorder %s51, %s67
    %p69 = scmp.eq.s32.totalorder %s31, 0
    %p70 = por %p68, %p69
    %s71 = ssub.s32 %s32, %s44
    %p72 = scmp.eq.s32.totalorder %s71, 0
    %s74 = sadd.s32 %s73, 1
    %s75 = scalar_select %p72, %s73, %s74
    %p78 = pneg %p72
    %p79 = scmp.eq.s32.totalorder %s25, 5
    %p80 = por %p78, %p79
    %p81 = scmp.ne.s32.totalorder %s73, %s76
    %p82 = scmp.eq.s32.totalorder %s25, 0
    %p83 = por %p81, %p82
    %p84 = scmp.ne.s32.totalorder %s73, %s76
    %p85 = scmp.eq.s32.totalorder %s30, 5
    %p86 = por %p84, %p85
    %p87 = scmp.ne.s32.totalorder %s76, %s77
    %p88 = scmp.eq.s32.totalorder %s30, 0
    %p89 = por %p87, %p88
    %p90 = scmp.ne.s32.totalorder %s76, %s77
    %p91 = scmp.eq.s32.totalorder %s31, 5
    %p92 = por %p90, %p91
    %p94 = scmp.ne.s32.totalorder %s77, %s93
    %p95 = scmp.eq.s32.totalorder %s31, 0
    %p96 = por %p94, %p95
    %s97 = ssub.s32 %s32, %s44
    %p98 = scmp.eq.s32.totalorder %s97, 0
    %s100 = sadd.s32 %s99, 1
    %s101 = scalar_select %p98, %s99, %s100
    %p104 = pneg %p98
    %p105 = scmp.eq.s32.totalorder %s25, 5
    %p106 = por %p104, %p105
    %p107 = scmp.ne.s32.totalorder %s99, %s102
    %p108 = scmp.eq.s32.totalorder %s25, 0
    %p109 = por %p107, %p108
    %p110 = scmp.ne.s32.totalorder %s99, %s102
    %p111 = scmp.eq.s32.totalorder %s30, 5
    %p112 = por %p110, %p111
    %p113 = scmp.ne.s32.totalorder %s102, %s103
    %p114 = scmp.eq.s32.totalorder %s30, 0
    %p115 = por %p113, %p114
    %p116 = scmp.ne.s32.totalorder %s102, %s103
    %p117 = scmp.eq.s32.totalorder %s31, 5
    %p118 = por %p116, %p117
    %p120 = scmp.ne.s32.totalorder %s103, %s119
    %p121 = scmp.eq.s32.totalorder %s31, 0
    %p122 = por %p120, %p121
    %s124 = sadd.s32 %s123, 1
    %p127 = scmp.eq.s32.totalorder %s25, 5
    %p128 = scmp.ne.s32.totalorder %s123, %s125
    %p129 = scmp.eq.s32.totalorder %s25, 0
    %p130 = por %p128, %p129
    %p131 = scmp.ne.s32.totalorder %s123, %s125
    %p132 = scmp.eq.s32.totalorder %s30, 5
    %p133 = por %p131, %p132
    %p134 = scmp.ne.s32.totalorder %s125, %s126
    %p135 = scmp.eq.s32.totalorder %s30, 0
    %p136 = por %p134, %p135
    %p137 = scmp.ne.s32.totalorder %s125, %s126
    %p138 = scmp.eq.s32.totalorder %s31, 5
    %p139 = por %p137, %p138
    %p141 = scmp.ne.s32.totalorder %s126, %s140
    %p142 = scmp.eq.s32.totalorder %s31, 0
    %p143 = por %p141, %p142
    %s145 = sadd.s32 %s144, 1
    %p148 = scmp.eq.s32.totalorder %s25, 5
    %p149 = scmp.ne.s32.totalorder %s144, %s146
    %p150 = scmp.eq.s32.totalorder %s25, 0
    %p151 = por %p149, %p150
    %p152 = scmp.ne.s32.totalorder %s144, %s146
    %p153 = scmp.eq.s32.totalorder %s30, 5
    %p154 = por %p152, %p153
    %p155 = scmp.ne.s32.totalorder %s146, %s147
    %p156 = scmp.eq.s32.totalorder %s30, 0
    %p157 = por %p155, %p156
    %p158 = scmp.ne.s32.totalorder %s146, %s147
    %p159 = scmp.eq.s32.totalorder %s31, 5
    %p160 = por %p158, %p159
    %p162 = scmp.ne.s32.totalorder %s147, %s161
    %p163 = scmp.eq.s32.totalorder %s31, 0
    %p164 = por %p162, %p163
    %s166 = sadd.s32 %s165, 1
    %p169 = scmp.eq.s32.totalorder %s25, 5
    %p170 = scmp.ne.s32.totalorder %s165, %s167
    %p171 = scmp.eq.s32.totalorder %s25, 0
    %p172 = por %p170, %p171
    %p173 = scmp.ne.s32.totalorder %s165, %s167
    %p174 = scmp.eq.s32.totalorder %s30, 5
    %p175 = por %p173, %p174
    %p176 = scmp.ne.s32.totalorder %s167, %s168
    %p177 = scmp.eq.s32.totalorder %s30, 0
    %p178 = por %p176, %p177
    %p179 = scmp.ne.s32.totalorder %s167, %s168
    %p180 = scmp.eq.s32.totalorder %s31, 5
    %p181 = por %p179, %p180
    %p183 = scmp.ne.s32.totalorder %s168, %s182
    %p184 = scmp.eq.s32.totalorder %s31, 0
    %p185 = por %p183, %p184
    %s187 = sadd.s32 %s186, 1
    %p190 = scmp.eq.s32.totalorder %s25, 5
    %p191 = scmp.ne.s32.totalorder %s186, %s188
    %p192 = scmp.eq.s32.totalorder %s25, 0
    %p193 = por %p191, %p192
    %p194 = scmp.ne.s32.totalorder %s186, %s188
    %p195 = scmp.eq.s32.totalorder %s30, 5
    %p196 = por %p194, %p195
    %p197 = scmp.ne.s32.totalorder %s188, %s189
    %p198 = scmp.eq.s32.totalorder %s30, 0
    %p199 = por %p197, %p198
    %p200 = scmp.ne.s32.totalorder %s188, %s189
    %p201 = scmp.eq.s32.totalorder %s31, 5
    %p202 = por %p200, %p201
    %p204 = scmp.ne.s32.totalorder %s189, %s203
    %p205 = scmp.eq.s32.totalorder %s31, 0
    %p206 = por %p204, %p205
    %s208 = sadd.s32 %s207, 1
    %p211 = scmp.eq.s32.totalorder %s25, 5
    %p212 = scmp.ne.s32.totalorder %s207, %s209
    %p213 = scmp.eq.s32.totalorder %s25, 0
    %p214 = por %p212, %p213
    %p215 = scmp.ne.s32.totalorder %s207, %s209
    %p216 = scmp.eq.s32.totalorder %s30, 5
    %p217 = por %p215, %p216
    %p218 = scmp.ne.s32.totalorder %s209, %s210
    %p219 = scmp.eq.s32.totalorder %s30, 0
    %p220 = por %p218, %p219
    %p221 = scmp.ne.s32.totalorder %s209, %s210
    %p222 = scmp.eq.s32.totalorder %s31, 5
    %p223 = por %p221, %p222
    %p225 = scmp.ne.s32.totalorder %s210, %s224
    %p226 = scmp.eq.s32.totalorder %s31, 0
    %p227 = por %p225, %p226
    %s229 = sadd.s32 %s228, 1
    %p232 = scmp.eq.s32.totalorder %s25, 5
    %p233 = scmp.ne.s32.totalorder %s228, %s230
    %p234 = scmp.eq.s32.totalorder %s25, 0
    %p235 = por %p233, %p234
    %p236 = scmp.ne.s32.totalorder %s228, %s230
    %p237 = scmp.eq.s32.totalorder %s30, 5
    %p238 = por %p236, %p237
    %p239 = scmp.ne.s32.totalorder %s230, %s231
    %p240 = scmp.eq.s32.totalorder %s30, 0
    %p241 = por %p239, %p240
    %p242 = scmp.ne.s32.totalorder %s230, %s231
    %p243 = scmp.eq.s32.totalorder %s31, 5
    %p244 = por %p242, %p243
    %p246 = scmp.ne.s32.totalorder %s231, %s245
    %p247 = scmp.eq.s32.totalorder %s31, 0
    %p248 = por %p246, %p247
    %s250 = sadd.s32 %s249, 1
    %p253 = scmp.eq.s32.totalorder %s25, 5
    %p254 = scmp.ne.s32.totalorder %s249, %s251
    %p255 = scmp.eq.s32.totalorder %s25, 0
    %p256 = por %p254, %p255
    %p257 = scmp.ne.s32.totalorder %s249, %s251
    %p258 = scmp.eq.s32.totalorder %s30, 5
    %p259 = por %p257, %p258
    %p260 = scmp.ne.s32.totalorder %s251, %s252
    %p261 = scmp.eq.s32.totalorder %s30, 0
    %p262 = por %p260, %p261
    %p263 = scmp.ne.s32.totalorder %s251, %s252
    %p264 = scmp.eq.s32.totalorder %s31, 5
    %p265 = por %p263, %p264
    %p267 = scmp.ne.s32.totalorder %s252, %s266
    %p268 = scmp.eq.s32.totalorder %s31, 0
    %p269 = por %p267, %p268
    %s271 = sadd.s32 %s270, 1
    %p274 = scmp.eq.s32.totalorder %s25, 5
    %p275 = scmp.ne.s32.totalorder %s270, %s272
    %p276 = scmp.eq.s32.totalorder %s25, 0
    %p277 = por %p275, %p276
    %p278 = scmp.ne.s32.totalorder %s270, %s272
    %p279 = scmp.eq.s32.totalorder %s30, 5
    %p280 = por %p278, %p279
    %p281 = scmp.ne.s32.totalorder %s272, %s273
    %p282 = scmp.eq.s32.totalorder %s30, 0
    %p283 = por %p281, %p282
    %p284 = scmp.ne.s32.totalorder %s272, %s273
    %p285 = scmp.eq.s32.totalorder %s31, 5
    %p286 = por %p284, %p285
    %p288 = scmp.ne.s32.totalorder %s273, %s287
    %p289 = scmp.eq.s32.totalorder %s31, 0
    %p290 = por %p288, %p289
    %s292 = sadd.s32 %s291, 1
    %p295 = scmp.eq.s32.totalorder %s25, 5
    %p296 = scmp.ne.s32.totalorder %s291, %s293
    %p297 = scmp.eq.s32.totalorder %s25, 0
    %p298 = por %p296, %p297
    %p299 = scmp.ne.s32.totalorder %s291, %s293
    %p300 = scmp.eq.s32.totalorder %s30, 5
    %p301 = por %p299, %p300
    %p302 = scmp.ne.s32.totalorder %s293, %s294
    %p303 = scmp.eq.s32.totalorder %s30, 0
    %p304 = por %p302, %p303
    %p305 = scmp.ne.s32.totalorder %s293, %s294
    %p306 = scmp.eq.s32.totalorder %s31, 5
    %p307 = por %p305, %p306
    %p309 = scmp.ne.s32.totalorder %s294, %s308
    %p310 = scmp.eq.s32.totalorder %s31, 0
    %p311 = por %p309, %p310
    %s312 = ssub.s32 %s32, %s44
    %p313 = scmp.eq.s32.totalorder %s312, 0
    %s315 = sadd.s32 %s314, 1
    %s316 = scalar_select %p313, %s314, %s315
    %p319 = pneg %p313
    %p320 = scmp.eq.s32.totalorder %s25, 5
    %p321 = por %p319, %p320
    %p322 = scmp.ne.s32.totalorder %s314, %s317
    %p323 = scmp.eq.s32.totalorder %s25, 0
    %p324 = por %p322, %p323
    %p325 = scmp.ne.s32.totalorder %s314, %s317
    %p326 = scmp.eq.s32.totalorder %s30, 5
    %p327 = por %p325, %p326
    %p328 = scmp.ne.s32.totalorder %s317, %s318
    %p329 = scmp.eq.s32.totalorder %s30, 0
    %p330 = por %p328, %p329
    %p331 = scmp.ne.s32.totalorder %s317, %s318
    %p332 = scmp.eq.s32.totalorder %s31, 5
    %p333 = por %p331, %p332
    %p335 = scmp.ne.s32.totalorder %s318, %s334
    %p336 = scmp.eq.s32.totalorder %s31, 0
    %p337 = por %p335, %p336
    %p338 = scmp.le.s32.totalorder 1, %s25
    %p339 = scmp.lt.s32.totalorder %s25, 7
    %p340 = pnand %p338, %p339
    %p341 = pneg %p340
    // Predicated region
    $region9: #{graphconsis_forward.3} parent=5 // pred_check
      _
    $region10: #{graphconsis_forward.3} parent=5 // pred_check_branch
      %343 = sbr.rel (%p340) target = $region12
    $region11: #{graphconsis_forward.3} parent=5 // pred_region
      %s344 = ssub.s32 %s25, 1
      // Predicated region
      $region13: #{graphconsis_forward.3} parent=11 // pred_check
        %p345 = pneg %p136
      $region14: #{graphconsis_forward.3} parent=11 // pred_check_branch
        %347 = sbr.rel (%p345) target = $region16
      $region15: #{graphconsis_forward.3} parent=11 // pred_region
        _
      $region16: #{graphconsis_forward.3} parent=11 // pred_fallthru
        _
      // Predicated region
      $region17: #{graphconsis_forward.3} parent=11 // pred_check
        %p348 = pneg %p157
      $region18: #{graphconsis_forward.3} parent=11 // pred_check_branch
        %350 = sbr.rel (%p348) target = $region20
      $region19: #{graphconsis_forward.3} parent=11 // pred_region
        _
      $region20: #{graphconsis_forward.3} parent=11 // pred_fallthru
        _
      // Predicated region
      $region21: #{graphconsis_forward.3} parent=11 // pred_check
        %p351 = pneg %p178
      $region22: #{graphconsis_forward.3} parent=11 // pred_check_branch
        %353 = sbr.rel (%p351) target = $region24
      $region23: #{graphconsis_forward.3} parent=11 // pred_region
        _
      $region24: #{graphconsis_forward.3} parent=11 // pred_fallthru
        _
      // Predicated region
      $region25: #{graphconsis_forward.3} parent=11 // pred_check
        %p354 = pneg %p199
      $region26: #{graphconsis_forward.3} parent=11 // pred_check_branch
        %356 = sbr.rel (%p354) target = $region28
      $region27: #{graphconsis_forward.3} parent=11 // pred_region
        _
      $region28: #{graphconsis_forward.3} parent=11 // pred_fallthru
        _
      // Predicated region
      $region29: #{graphconsis_forward.3} parent=11 // pred_check
        %p357 = pneg %p220
      $region30: #{graphconsis_forward.3} parent=11 // pred_check_branch
        %359 = sbr.rel (%p357) target = $region32
      $region31: #{graphconsis_forward.3} parent=11 // pred_region
        _
      $region32: #{graphconsis_forward.3} parent=11 // pred_fallthru
        _
      // Predicated region
      $region33: #{graphconsis_forward.3} parent=11 // pred_check
        %p360 = pneg %p241
      $region34: #{graphconsis_forward.3} parent=11 // pred_check_branch
        %362 = sbr.rel (%p360) target = $region36
      $region35: #{graphconsis_forward.3} parent=11 // pred_region
        _
      $region36: #{graphconsis_forward.3} parent=11 // pred_fallthru
        _
      // Predicated region
      $region37: #{graphconsis_forward.3} parent=11 // pred_check
        %p363 = pneg %p262
      $region38: #{graphconsis_forward.3} parent=11 // pred_check_branch
        %365 = sbr.rel (%p363) target = $region40
      $region39: #{graphconsis_forward.3} parent=11 // pred_region
        _
      $region40: #{graphconsis_forward.3} parent=11 // pred_fallthru
        _
      // Predicated region
      $region41: #{graphconsis_forward.3} parent=11 // pred_check
        %p366 = pneg %p283
      $region42: #{graphconsis_forward.3} parent=11 // pred_check_branch
        %368 = sbr.rel (%p366) target = $region44
      $region43: #{graphconsis_forward.3} parent=11 // pred_region
        _
      $region44: #{graphconsis_forward.3} parent=11 // pred_fallthru
        _
      // Predicated region
      $region45: #{graphconsis_forward.3} parent=11 // pred_check
        %p369 = pneg %p304
      $region46: #{graphconsis_forward.3} parent=11 // pred_check_branch
        %371 = sbr.rel (%p369) target = $region48
      $region47: #{graphconsis_forward.3} parent=11 // pred_region
        _
      $region48: #{graphconsis_forward.3} parent=11 // pred_fallthru
        _
    $region12: #{graphconsis_forward.3} parent=5 // pred_fallthru
      _
    %p372 = scmp.lt.s32.totalorder %s25, 6
    // Predicated region
    $region49: #{graphconsis_forward.3} parent=5 // pred_check
      %p373 = pneg %p372
    $region50: #{graphconsis_forward.3} parent=5 // pred_check_branch
      %375 = sbr.rel (%p373) target = $region52
    $region51: #{graphconsis_forward.3} parent=5 // pred_region
      // Predicated region
      $region53: #{graphconsis_forward.3} parent=51 // pred_check
        %p376 = pneg %p57
      $region54: #{graphconsis_forward.3} parent=51 // pred_check_branch
        %378 = sbr.rel (%p376) target = $region56
      $region55: #{graphconsis_forward.3} parent=51 // pred_region
        %p379 = scmp.lt.s32.totalorder %s32, 1
        %s380 = scalar_select %p379, %s32, 1
        %s381 = smul.addr %s380, 8
        %s382 = scalar_lea.vmem %s1, %s381
      $region56: #{graphconsis_forward.3} parent=51 // pred_fallthru
        _
      // Predicated region
      $region57: #{graphconsis_forward.3} parent=51 // pred_check
        %p383 = pneg %p83
      $region58: #{graphconsis_forward.3} parent=51 // pred_check_branch
        %385 = sbr.rel (%p383) target = $region60
      $region59: #{graphconsis_forward.3} parent=51 // pred_region
        %p386 = scmp.lt.s32.totalorder %s32, 1
        %s387 = scalar_select %p386, %s32, 1
        %s388 = smul.addr %s387, 8
        %s389 = scalar_lea.vmem %s2, %s388
      $region60: #{graphconsis_forward.3} parent=51 // pred_fallthru
        _
      // Predicated region
      $region61: #{graphconsis_forward.3} parent=51 // pred_check
        %p390 = pneg %p109
      $region62: #{graphconsis_forward.3} parent=51 // pred_check_branch
        %392 = sbr.rel (%p390) target = $region64
      $region63: #{graphconsis_forward.3} parent=51 // pred_region
        %p393 = scmp.lt.s32.totalorder %s32, 1
        %s394 = scalar_select %p393, %s32, 1
        %s395 = smul.addr %s394, 8
        %s396 = scalar_lea.vmem %s3, %s395
      $region64: #{graphconsis_forward.3} parent=51 // pred_fallthru
        _
    $region52: #{graphconsis_forward.3} parent=5 // pred_fallthru
      _
    %p397 = scmp.le.s32.totalorder 1, %s25
    %p398 = scmp.lt.s32.totalorder %s25, 7
    %p399 = pnand %p397, %p398
    %p400 = pneg %p399
    // Predicated region
    $region65: #{graphconsis_forward.3} parent=5 // pred_check
      _
    $region66: #{graphconsis_forward.3} parent=5 // pred_check_branch
      %402 = sbr.rel (%p399) target = $region68
    $region67: #{graphconsis_forward.3} parent=5 // pred_region
      %s403 = ssub.s32 %s25, 1
      %p404 = scmp.lt.s32.totalorder %s34, 1
      %s405 = scalar_select %p404, %s34, 1
      %s406 = smul.addr %s405, 8
      %s407 = scalar_lea.vmem %s1, %s406
      %p408 = pneg %p63
      %p409 = pneg %p60
      %p410 = scmp.lt.s32.totalorder %s34, 1
      %s411 = scalar_select %p410, %s34, 1
      %s412 = smul.addr %s411, 8
      %s413 = scalar_lea.vmem %s2, %s412
      %p414 = pneg %p89
      %p415 = pneg %p86
      %p416 = scmp.lt.s32.totalorder %s34, 1
      %s417 = scalar_select %p416, %s34, 1
      %s418 = smul.addr %s417, 8
      %s419 = scalar_lea.vmem %s3, %s418
      %p420 = pneg %p115
      %p421 = pneg %p112
      %p422 = pneg %p136
      %p423 = pneg %p133
      %p424 = pneg %p157
      %p425 = pneg %p154
      %p426 = pneg %p178
      %p427 = pneg %p175
      %p428 = pneg %p199
      %p429 = pneg %p196
      %p430 = pneg %p220
      %p431 = pneg %p217
      %p432 = pneg %p241
      %p433 = pneg %p238
      %p434 = pneg %p262
      %p435 = pneg %p259
      %p436 = pneg %p283
      %p437 = pneg %p280
      %p438 = pneg %p304
      %p439 = pneg %p301
      %p440 = pneg %p330
      %p441 = pneg %p327
      %p442 = scmp.lt.s32.totalorder %s34, 1
      %s443 = scalar_select %p442, %s34, 1
      %s444 = smul.addr %s443, 8
      %s445 = scalar_lea.vmem %s13, %s444
      %p446 = scmp.lt.s32.totalorder %s34, 1
      %s447 = scalar_select %p446, %s34, 1
      %s448 = smul.addr %s447, 8
      %s449 = scalar_lea.vmem %s1, %s448
      %p450 = scmp.lt.s32.totalorder %s34, 1
      %s451 = scalar_select %p450, %s34, 1
      %s452 = smul.addr %s451, 8
      %s453 = scalar_lea.vmem %s2, %s452
      %p454 = scmp.lt.s32.totalorder %s34, 1
      %s455 = scalar_select %p454, %s34, 1
      %s456 = smul.addr %s455, 8
      %s457 = scalar_lea.vmem %s3, %s456
      %p458 = scmp.lt.s32.totalorder %s34, 1
      %s459 = scalar_select %p458, %s34, 1
      %s460 = smul.addr %s459, 8
      %s461 = scalar_lea.vmem %s13, %s460
      %p462 = scmp.eq.s32.totalorder %s35, 0
      // Predicated region
      $region69: #{graphconsis_forward.3} parent=67 // pred_check
        %p463 = pneg %p462
      $region70: #{graphconsis_forward.3} parent=67 // pred_check_branch
        %465 = sbr.rel (%p463) target = $region72
      $region71: #{graphconsis_forward.3} parent=67 // pred_region
        %vm466 = vcmask 7168
        %467 = vst.msk [vmem:[#allocation4] sm:$0xff] %vm466, 0.0
        %vm468 = vcmask 523264
        %469 = vst.msk [vmem:[#allocation5] sm:$0xff] %vm468, 0.0
        %470 = vst.msk [vmem:[#allocation6] sm:$0xff] %vm468, 0.0
        %v471 = vld [vmem:[%s453] sm:$0xff]
        %v472 = vld [vmem:[%s5] sm:$0xff]
        %v473 = vld [vmem:[%s5 + $0x8] sm:$0xff]
        %v474 = vld [vmem:[%s6] sm:$0x1]
        %v476 = vlaneseq
        %v477 = vshrl.u32 %v476, 7
        %v478 = vsub.s32 0, %v477
        %v479 = vrot.slane %v474, %v478
        %vm481 = vcmask 130048
        %v483 = vsel %vm481, %v471, 0
        %485 = vmatprep.subr.mxu0 0.0
        %486 = vmatpush1.msra.mxu0 0.0
        %487 = vmatprep.subr.mxu0 0.0
        %488 = vmatpush1.msra.mxu0 0.0
        %489 = vmatprep.subr.mxu0 0.0
        %490 = vmatpush1.msra.mxu0 0.0
        %491 = vmatprep.subr.mxu0 0.0
        %492 = vmatpush1.msra.mxu0 0.0
        %493 = vmatprep.subr.mxu0 0.0
        %494 = vmatpush1.msra.mxu0 0.0
        %495 = vmatprep.subr.mxu0 0.0
        %496 = vmatpush1.msra.mxu0 0.0
        %497 = vmatprep.subr.mxu0 0.0
        %498 = vmatpush1.msra.mxu0 0.0
        %499 = vmatprep.subr.mxu0 0.0
        %500 = vmatpush1.msra.mxu0 0.0
        %501 = vmatprep.subr.mxu0 0.0
        %502 = vmatpush1.msra.mxu0 0.0
        %503 = vmatprep.subr.mxu0 0.0
        %504 = vmatpush1.msra.mxu0 0.0
        %505 = vmatprep.subr.mxu0 0.0
        %506 = vmatpush1.msra.mxu0 0.0
        %507 = vmatprep.subr.mxu0 0.0
        %508 = vmatpush1.msra.mxu0 0.0
        %509 = vmatprep.subr.mxu0 0.0
        %510 = vmatpush1.msra.mxu0 0.0
        %511 = vmatprep.subr.mxu0 0.0
        %512 = vmatpush1.msra.mxu0 0.0
        %513 = vmatprep.subr.mxu0 0.0
        %514 = vmatpush1.msra.mxu0 %v473
        %515 = vmatprep.subr.mxu0 0.0
        %516 = vmatpush1.msra.mxu0 %v472
        %517 = vmatprep.subr.mxu0 0.0
        %518 = vmatpush2.msra.mxu0 0.0
        %519 = vmatprep.subr.mxu0 0.0
        %520 = vmatpush2.msra.mxu0 0.0
        %521 = vmatprep.subr.mxu0 0.0
        %522 = vmatpush2.msra.mxu0 0.0
        %523 = vmatprep.subr.mxu0 0.0
        %524 = vmatpush2.msra.mxu0 0.0
        %525 = vmatprep.subr.mxu0 0.0
        %526 = vmatpush2.msra.mxu0 0.0
        %527 = vmatprep.subr.mxu0 0.0
        %528 = vmatpush2.msra.mxu0 0.0
        %529 = vmatprep.subr.mxu0 0.0
        %530 = vmatpush2.msra.mxu0 0.0
        %531 = vmatprep.subr.mxu0 0.0
        %532 = vmatpush2.msra.mxu0 0.0
        %533 = vmatprep.subr.mxu0 0.0
        %534 = vmatpush2.msra.mxu0 0.0
        %535 = vmatprep.subr.mxu0 0.0
        %536 = vmatpush2.msra.mxu0 0.0
        %537 = vmatprep.subr.mxu0 0.0
        %538 = vmatpush2.msra.mxu0 0.0
        %539 = vmatprep.subr.mxu0 0.0
        %540 = vmatpush2.msra.mxu0 0.0
        %541 = vmatprep.subr.mxu0 0.0
        %542 = vmatpush2.msra.mxu0 0.0
        %543 = vmatprep.subr.mxu0 0.0
        %544 = vmatpush2.msra.mxu0 0.0
        %545 = vmatprep.subr.mxu0 0.0
        %546 = vmatpush2.msra.mxu0 0.0
        %547 = vmatprep.subr.mxu0 0.0
        %548 = vmatpush2.msra.mxu0 0.0
        %549 = vmatprep.mubr.f32.mxu0 0.0
        %550 = vmatmul.mubr.f32.gmra.mxu0 %v483
        %v551 = vpop.f32.mrf.mxu0
        %v552 = vadd.f32 %v479, %v551
        %v553 = vpop.f32.mrf.mxu0
        %554 = vdwg.mxu0
        %555 = vst.msk [vmem:[#allocation3] sm:$0xff] %vm468, %v552
      $region72: #{graphconsis_forward.3} parent=67 // pred_fallthru
        _
      %s556 = smul.u32 %s34, 8
      %s557 = smul.u32 %s35, 8
      loop: start=0, step=1, limit=8
      $region73: #{graphconsis_forward.3} parent=67 // loop_pre_header
        _
      $region74: #{graphconsis_forward.3} parent=67 // loop_header
        %s559 = sphi 0, %s563
        %p560 = scmp.ge.s32.totalorder %s559, 8
      $region75: #{graphconsis_forward.3} parent=67 // loop_header_branch
        %562 = sbr.rel (%p560) target = $region79
      $region76: #{graphconsis_forward.3} parent=67 // loop_body
        loop: start=0, step=1, limit=8
        $region80: #{graphconsis_forward.3} parent=76 // loop_pre_header
          _
        $region81: #{graphconsis_forward.3} parent=76 // loop_header
          %s565 = sphi 0, %s569
          %p566 = scmp.ge.s32.totalorder %s565, 8
        $region82: #{graphconsis_forward.3} parent=76 // loop_header_branch
          %568 = sbr.rel (%p566) target = $region86
        $region83: #{graphconsis_forward.3} parent=76 // loop_body
          %s570 = sadd.s32 %s556, %s565
          %s571 = sadd.s32 %s557, %s559
          %s572 = sshra.s32 %s571, 7
          %s573 = sand.u32 %s571, 127
          %s574 = sadd.s32 %s572, %s570
          %s575 = smul.u32 %s574, 128
          %s576 = sshra.s32 %s571, 7
          %s577 = sand.u32 %s571, 127
          %s578 = sadd.s32 %s575, %s577
          %s579 = sld [smem:[#allocation8 + %s578]]
          %s580 = scalar_lea.vmem %s4, %s579
          %v581 = vld [vmem:[%s580] sm:$0x1]
          %s582 = smul.u32 %s559, 8
          %s583 = sadd.s32 %s582, %s565
          %s584 = scalar_lea.vmem [#allocation2], %s583
          %vm585 = vcmask 516096
          %586 = vst.msk [vmem:[%s584] sm:$0x1] %vm585, %v581
        $region84: #{graphconsis_forward.3} parent=76 // loop_footer
          %s569 = sadd.s32 1, %s565
        $region85: #{graphconsis_forward.3} parent=76 // loop_footer_branch
          %564 = sbr.rel target = $region81
        $region86: #{graphconsis_forward.3} parent=76 // loop_exit
          _
      $region77: #{graphconsis_forward.3} parent=67 // loop_footer
        %s563 = sadd.s32 1, %s559
      $region78: #{graphconsis_forward.3} parent=67 // loop_footer_branch
        %558 = sbr.rel target = $region74
      $region79: #{graphconsis_forward.3} parent=67 // loop_exit
        _
      %v587 = vld [vmem:[#allocation2] sm:$0xff]
      %v588 = vld [vmem:[#allocation2 + $0x8] sm:$0xff]
      %v589 = vld [vmem:[#allocation2 + $0x10] sm:$0xff]
      %v590 = vld [vmem:[#allocation2 + $0x18] sm:$0xff]
      %v591 = vld [vmem:[#allocation2 + $0x20] sm:$0xff]
      %v592 = vld [vmem:[#allocation2 + $0x28] sm:$0xff]
      %v593 = vld [vmem:[#allocation2 + $0x30] sm:$0xff]
      %v594 = vld [vmem:[#allocation2 + $0x38] sm:$0xff]
      %v595 = vld [vmem:[#allocation3] sm:$0xff]
      %v596 = vsub.f32 %v595, %v587
      %v597 = vsub.f32 %v595, %v588
      %v598 = vsub.f32 %v595, %v589
      %v599 = vsub.f32 %v595, %v590
      %v600 = vsub.f32 %v595, %v591
      %v601 = vsub.f32 %v595, %v592
      %v602 = vsub.f32 %v595, %v593
      %v603 = vsub.f32 %v595, %v594
      %v604 = vadd.f32 %v596, 1e-06
      %v605 = vadd.f32 %v597, 1e-06
      %v606 = vadd.f32 %v598, 1e-06
      %v607 = vadd.f32 %v599, 1e-06
      %v608 = vadd.f32 %v600, 1e-06
      %v609 = vadd.f32 %v601, 1e-06
      %v610 = vadd.f32 %v602, 1e-06
      %v611 = vadd.f32 %v603, 1e-06
      %v612 = vmul.f32 %v604, %v604
      %v613 = vmul.f32 %v605, %v605
      %v614 = vmul.f32 %v606, %v606
      %v615 = vmul.f32 %v607, %v607
      %v616 = vmul.f32 %v608, %v608
      %v617 = vmul.f32 %v609, %v609
      %v618 = vmul.f32 %v610, %v610
      %v619 = vmul.f32 %v611, %v611
      %vm620 = vcmask 523264
      %v622 = vsel %vm620, %v612, 0
      %v625 = vsel %vm620, %v613, 0
      %v628 = vsel %vm620, %v614, 0
      %v631 = vsel %vm620, %v615, 0
      %v634 = vsel %vm620, %v616, 0
      %v637 = vsel %vm620, %v617, 0
      %v640 = vsel %vm620, %v618, 0
      %v643 = vsel %vm620, %v619, 0
      %645 = vmatprep.subr.mxu0 0.0
      %646 = vmatpush1.msra.mxu0 0.0
      %647 = vmatprep.subr.mxu0 0.0
      %648 = vmatpush1.msra.mxu0 0.0
      %649 = vmatprep.subr.mxu0 0.0
      %650 = vmatpush1.msra.mxu0 0.0
      %651 = vmatprep.subr.mxu0 0.0
      %652 = vmatpush1.msra.mxu0 0.0
      %653 = vmatprep.subr.mxu0 0.0
      %654 = vmatpush1.msra.mxu0 0.0
      %655 = vmatprep.subr.mxu0 0.0
      %656 = vmatpush1.msra.mxu0 0.0
      %657 = vmatprep.subr.mxu0 0.0
      %658 = vmatpush1.msra.mxu0 0.0
      %659 = vmatprep.subr.mxu0 0.0
      %660 = vmatpush1.msra.mxu0 0.0
      %661 = vmatprep.subr.mxu0 0.0
      %662 = vmatpush1.msra.mxu0 1.0
      %663 = vmatprep.subr.mxu0 0.0
      %664 = vmatpush1.msra.mxu0 1.0
      %665 = vmatprep.subr.mxu0 0.0
      %666 = vmatpush1.msra.mxu0 1.0
      %667 = vmatprep.subr.mxu0 0.0
      %668 = vmatpush1.msra.mxu0 1.0
      %669 = vmatprep.subr.mxu0 0.0
      %670 = vmatpush1.msra.mxu0 1.0
      %671 = vmatprep.subr.mxu0 0.0
      %672 = vmatpush1.msra.mxu0 1.0
      %673 = vmatprep.subr.mxu0 0.0
      %674 = vmatpush1.msra.mxu0 1.0
      %675 = vmatprep.subr.mxu0 0.0
      %676 = vmatpush1.msra.mxu0 1.0
      %677 = vmatprep.subr.mxu0 0.0
      %678 = vmatpush2.msra.mxu0 0.0
      %679 = vmatprep.subr.mxu0 0.0
      %680 = vmatpush2.msra.mxu0 0.0
      %681 = vmatprep.subr.mxu0 0.0
      %682 = vmatpush2.msra.mxu0 0.0
      %683 = vmatprep.subr.mxu0 0.0
      %684 = vmatpush2.msra.mxu0 0.0
      %685 = vmatprep.subr.mxu0 0.0
      %686 = vmatpush2.msra.mxu0 0.0
      %687 = vmatprep.subr.mxu0 0.0
      %688 = vmatpush2.msra.mxu0 0.0
      %689 = vmatprep.subr.mxu0 0.0
      %690 = vmatpush2.msra.mxu0 0.0
      %691 = vmatprep.subr.mxu0 0.0
      %692 = vmatpush2.msra.mxu0 0.0
      %693 = vmatprep.subr.mxu0 0.0
      %694 = vmatpush2.msra.mxu0 0.0
      %695 = vmatprep.subr.mxu0 0.0
      %696 = vmatpush2.msra.mxu0 0.0
      %697 = vmatprep.subr.mxu0 0.0
      %698 = vmatpush2.msra.mxu0 0.0
      %699 = vmatprep.subr.mxu0 0.0
      %700 = vmatpush2.msra.mxu0 0.0
      %701 = vmatprep.subr.mxu0 0.0
      %702 = vmatpush2.msra.mxu0 0.0
      %703 = vmatprep.subr.mxu0 0.0
      %704 = vmatpush2.msra.mxu0 0.0
      %705 = vmatprep.subr.mxu0 0.0
      %706 = vmatpush2.msra.mxu0 0.0
      %707 = vmatprep.subr.mxu0 0.0
      %708 = vmatpush2.msra.mxu0 0.0
      %709 = vmatprep.mubr.f32.mxu0 0.0
      %710 = vmatmul.mubr.f32.gmra.mxu0 %v622
      %v711 = vpop.f32.mrf.mxu0
      %v712 = vadd.f32 0.0, %v711
      %v713 = vpop.f32.mrf.mxu0
      %714 = vmatprep.mubr.f32.mxu0 0.0
      %715 = vmatmul.mubr.f32.gmra.mxu0 %v625
      %v716 = vpop.f32.mrf.mxu0
      %v717 = vadd.f32 0.0, %v716
      %v718 = vpop.f32.mrf.mxu0
      %719 = vmatprep.mubr.f32.mxu0 0.0
      %720 = vmatmul.mubr.f32.gmra.mxu0 %v628
      %v721 = vpop.f32.mrf.mxu0
      %v722 = vadd.f32 0.0, %v721
      %v723 = vpop.f32.mrf.mxu0
      %724 = vmatprep.mubr.f32.mxu0 0.0
      %725 = vmatmul.mubr.f32.gmra.mxu0 %v631
      %v726 = vpop.f32.mrf.mxu0
      %v727 = vadd.f32 0.0, %v726
      %v728 = vpop.f32.mrf.mxu0
      %729 = vmatprep.mubr.f32.mxu0 0.0
      %730 = vmatmul.mubr.f32.gmra.mxu0 %v634
      %v731 = vpop.f32.mrf.mxu0
      %v732 = vadd.f32 0.0, %v731
      %v733 = vpop.f32.mrf.mxu0
      %734 = vmatprep.mubr.f32.mxu0 0.0
      %735 = vmatmul.mubr.f32.gmra.mxu0 %v637
      %v736 = vpop.f32.mrf.mxu0
      %v737 = vadd.f32 0.0, %v736
      %v738 = vpop.f32.mrf.mxu0
      %739 = vmatprep.mubr.f32.mxu0 0.0
      %740 = vmatmul.mubr.f32.gmra.mxu0 %v640
      %v741 = vpop.f32.mrf.mxu0
      %v742 = vadd.f32 0.0, %v741
      %v743 = vpop.f32.mrf.mxu0
      %744 = vmatprep.mubr.f32.mxu0 0.0
      %745 = vmatmul.mubr.f32.gmra.mxu0 %v643
      %v746 = vpop.f32.mrf.mxu0
      %v747 = vadd.f32 0.0, %v746
      %v748 = vpop.f32.mrf.mxu0
      %749 = vdwg.mxu0
      %v750 = vrsqrt.pop %v712
      %v751 = vmul.f32 %v712, %v750
      %vm752 = vcmp.eq.f32.partialorder %v712, inf
      %v753 = vsel %vm752, %v712, %v751
      %vm754 = vcmp.eq.f32.partialorder %v712, 0.0
      %v755 = vand.u32 %v712, 2147483648
      %v756 = vsel %vm754, %v755, %v753
      %v757 = vrsqrt.pop %v717
      %v758 = vmul.f32 %v717, %v757
      %vm759 = vcmp.eq.f32.partialorder %v717, inf
      %v760 = vsel %vm759, %v717, %v758
      %vm761 = vcmp.eq.f32.partialorder %v717, 0.0
      %v762 = vand.u32 %v717, 2147483648
      %v763 = vsel %vm761, %v762, %v760
      %v764 = vrsqrt.pop %v722
      %v765 = vmul.f32 %v722, %v764
      %vm766 = vcmp.eq.f32.partialorder %v722, inf
      %v767 = vsel %vm766, %v722, %v765
      %vm768 = vcmp.eq.f32.partialorder %v722, 0.0
      %v769 = vand.u32 %v722, 2147483648
      %v770 = vsel %vm768, %v769, %v767
      %v771 = vrsqrt.pop %v727
      %v772 = vmul.f32 %v727, %v771
      %vm773 = vcmp.eq.f32.partialorder %v727, inf
      %v774 = vsel %vm773, %v727, %v772
      %vm775 = vcmp.eq.f32.partialorder %v727, 0.0
      %v776 = vand.u32 %v727, 2147483648
      %v777 = vsel %vm775, %v776, %v774
      %v778 = vrsqrt.pop %v732
      %v779 = vmul.f32 %v732, %v778
      %vm780 = vcmp.eq.f32.partialorder %v732, inf
      %v781 = vsel %vm780, %v732, %v779
      %vm782 = vcmp.eq.f32.partialorder %v732, 0.0
      %v783 = vand.u32 %v732, 2147483648
      %v784 = vsel %vm782, %v783, %v781
      %v785 = vrsqrt.pop %v737
      %v786 = vmul.f32 %v737, %v785
      %vm787 = vcmp.eq.f32.partialorder %v737, inf
      %v788 = vsel %vm787, %v737, %v786
      %vm789 = vcmp.eq.f32.partialorder %v737, 0.0
      %v790 = vand.u32 %v737, 2147483648
      %v791 = vsel %vm789, %v790, %v788
      %v792 = vrsqrt.pop %v742
      %v793 = vmul.f32 %v742, %v792
      %vm794 = vcmp.eq.f32.partialorder %v742, inf
      %v795 = vsel %vm794, %v742, %v793
      %vm796 = vcmp.eq.f32.partialorder %v742, 0.0
      %v797 = vand.u32 %v742, 2147483648
      %v798 = vsel %vm796, %v797, %v795
      %v799 = vrsqrt.pop %v747
      %v800 = vmul.f32 %v747, %v799
      %vm801 = vcmp.eq.f32.partialorder %v747, inf
      %v802 = vsel %vm801, %v747, %v800
      %vm803 = vcmp.eq.f32.partialorder %v747, 0.0
      %v804 = vand.u32 %v747, 2147483648
      %v805 = vsel %vm803, %v804, %v802
      %v806 = vsub.f32 0.0, %v756
      %v807 = vsub.f32 0.0, %v763
      %v808 = vsub.f32 0.0, %v770
      %v809 = vsub.f32 0.0, %v777
      %v810 = vsub.f32 0.0, %v784
      %v811 = vsub.f32 0.0, %v791
      %v812 = vsub.f32 0.0, %v798
      %v813 = vsub.f32 0.0, %v805
      %v814 = vmul.f32 %v806, 1.442695
      %v815 = vpow.pop %v814
      %v816 = vmul.f32 %v807, 1.442695
      %v817 = vpow.pop %v816
      %v818 = vmul.f32 %v808, 1.442695
      %v819 = vpow.pop %v818
      %v820 = vmul.f32 %v809, 1.442695
      %v821 = vpow.pop %v820
      %v822 = vmul.f32 %v810, 1.442695
      %v823 = vpow.pop %v822
      %v824 = vmul.f32 %v811, 1.442695
      %v825 = vpow.pop %v824
      %v826 = vmul.f32 %v812, 1.442695
      %v827 = vpow.pop %v826
      %v828 = vmul.f32 %v813, 1.442695
      %v829 = vpow.pop %v828
      %vm830 = vcmp.le.f32.partialorder %v815, 0.001
      %vm831 = vcmp.le.f32.partialorder %v817, 0.001
      %vm832 = vcmp.le.f32.partialorder %v819, 0.001
      %vm833 = vcmp.le.f32.partialorder %v821, 0.001
      %vm834 = vcmp.le.f32.partialorder %v823, 0.001
      %vm835 = vcmp.le.f32.partialorder %v825, 0.001
      %vm836 = vcmp.le.f32.partialorder %v827, 0.001
      %vm837 = vcmp.le.f32.partialorder %v829, 0.001
      %v838 = vsel %vm830, 0.0, %v815
      %v839 = vsel %vm831, 0.0, %v817
      %v840 = vsel %vm832, 0.0, %v819
      %v841 = vsel %vm833, 0.0, %v821
      %v842 = vsel %vm834, 0.0, %v823
      %v843 = vsel %vm835, 0.0, %v825
      %v844 = vsel %vm836, 0.0, %v827
      %v845 = vsel %vm837, 0.0, %v829
      %v846 = vstv %s557
      %v847 = vadd.s32 %v846, 1
      %v848 = vadd.s32 %v846, 2
      %v849 = vadd.s32 %v846, 3
      %v850 = vadd.s32 %v846, 4
      %v851 = vadd.s32 %v846, 5
      %v852 = vadd.s32 %v846, 6
      %v853 = vadd.s32 %v846, 7
      %v854 = vld [vmem:[%s449] sm:$0xff]
      %vm855 = vcmp.lt.s32.totalorder %v846, %v854
      %vm856 = vcmp.lt.s32.totalorder %v847, %v854
      %vm857 = vcmp.lt.s32.totalorder %v848, %v854
      %vm858 = vcmp.lt.s32.totalorder %v849, %v854
      %vm859 = vcmp.lt.s32.totalorder %v850, %v854
      %vm860 = vcmp.lt.s32.totalorder %v851, %v854
      %vm861 = vcmp.lt.s32.totalorder %v852, %v854
      %vm862 = vcmp.lt.s32.totalorder %v853, %v854
      %v863 = vsel %vm855, 1, 0
      %v864 = vsel %vm856, 1, 0
      %v865 = vsel %vm857, 1, 0
      %v866 = vsel %vm858, 1, 0
      %v867 = vsel %vm859, 1, 0
      %v868 = vsel %vm860, 1, 0
      %v869 = vsel %vm861, 1, 0
      %v870 = vsel %vm862, 1, 0
      %v871 = vcvt.s32.f32 %v863
      %v872 = vcvt.s32.f32 %v864
      %v873 = vcvt.s32.f32 %v865
      %v874 = vcvt.s32.f32 %v866
      %v875 = vcvt.s32.f32 %v867
      %v876 = vcvt.s32.f32 %v868
      %v877 = vcvt.s32.f32 %v869
      %v878 = vcvt.s32.f32 %v870
      %v879 = vmul.f32 %v838, %v871
      %v880 = vmul.f32 %v839, %v872
      %v881 = vmul.f32 %v840, %v873
      %v882 = vmul.f32 %v841, %v874
      %v883 = vmul.f32 %v842, %v875
      %v884 = vmul.f32 %v843, %v876
      %v885 = vmul.f32 %v844, %v877
      %v886 = vmul.f32 %v845, %v878
      %v887 = vld [vmem:[#allocation4] sm:$0xff]
      %vm888 = vcmask 7168
      %v889 = vsel %vm888, %v879, 0.0
      %v890 = vsel %vm888, %v880, 0.0
      %v891 = vadd.f32 %v889, %v890
      %v892 = vsel %vm888, %v881, 0.0
      %v893 = vadd.f32 %v891, %v892
      %v894 = vsel %vm888, %v882, 0.0
      %v895 = vadd.f32 %v893, %v894
      %v896 = vsel %vm888, %v883, 0.0
      %v897 = vadd.f32 %v895, %v896
      %v898 = vsel %vm888, %v884, 0.0
      %v899 = vadd.f32 %v897, %v898
      %v900 = vsel %vm888, %v885, 0.0
      %v901 = vadd.f32 %v899, %v900
      %v902 = vsel %vm888, %v886, 0.0
      %v903 = vadd.f32 %v901, %v902
      %v904 = vadd.f32 %v887, %v903
      %905 = vst.msk [vmem:[#allocation4] sm:$0xff] %vm888, %v904
      %v906 = vld [vmem:[#allocation5] sm:$0xff]
      %908 = vset.pattern.permute.xlu0 0
      %909 = vperm.xlu0 %908, %v879
      %v910 = vpop.permute.xlu0 %909
      %913 = vset.pattern.permute.xlu0 0
      %914 = vperm.xlu0 %913, %v880
      %v915 = vpop.permute.xlu0 %914
      %918 = vset.pattern.permute.xlu0 0
      %919 = vperm.xlu0 %918, %v881
      %v920 = vpop.permute.xlu0 %919
      %923 = vset.pattern.permute.xlu0 0
      %924 = vperm.xlu0 %923, %v882
      %v925 = vpop.permute.xlu0 %924
      %928 = vset.pattern.permute.xlu0 0
      %929 = vperm.xlu0 %928, %v883
      %v930 = vpop.permute.xlu0 %929
      %933 = vset.pattern.permute.xlu0 0
      %934 = vperm.xlu0 %933, %v884
      %v935 = vpop.permute.xlu0 %934
      %938 = vset.pattern.permute.xlu0 0
      %939 = vperm.xlu0 %938, %v885
      %v940 = vpop.permute.xlu0 %939
      %943 = vset.pattern.permute.xlu0 0
      %944 = vperm.xlu0 %943, %v886
      %v945 = vpop.permute.xlu0 %944
      %v947 = vmul.f32 %v910, %v587
      %v948 = vmul.f32 %v915, %v588
      %v949 = vmul.f32 %v920, %v589
      %v950 = vmul.f32 %v925, %v590
      %v951 = vmul.f32 %v930, %v591
      %v952 = vmul.f32 %v935, %v592
      %v953 = vmul.f32 %v940, %v593
      %v954 = vmul.f32 %v945, %v594
      %v955 = vsel %vm620, %v947, 0.0
      %v956 = vsel %vm620, %v948, 0.0
      %v957 = vadd.f32 %v955, %v956
      %v958 = vsel %vm620, %v949, 0.0
      %v959 = vadd.f32 %v957, %v958
      %v960 = vsel %vm620, %v950, 0.0
      %v961 = vadd.f32 %v959, %v960
      %v962 = vsel %vm620, %v951, 0.0
      %v963 = vadd.f32 %v961, %v962
      %v964 = vsel %vm620, %v952, 0.0
      %v965 = vadd.f32 %v963, %v964
      %v966 = vsel %vm620, %v953, 0.0
      %v967 = vadd.f32 %v965, %v966
      %v968 = vsel %vm620, %v954, 0.0
      %v969 = vadd.f32 %v967, %v968
      %v970 = vadd.f32 %v906, %v969
      %971 = vst.msk [vmem:[#allocation5] sm:$0xff] %vm620, %v970
      %v972 = vld [vmem:[#allocation6] sm:$0xff]
      %974 = vset.pattern.permute.xlu0 0
      %975 = vperm.xlu0 %974, %v871
      %v976 = vpop.permute.xlu0 %975
      %979 = vset.pattern.permute.xlu0 0
      %980 = vperm.xlu0 %979, %v872
      %v981 = vpop.permute.xlu0 %980
      %984 = vset.pattern.permute.xlu0 0
      %985 = vperm.xlu0 %984, %v873
      %v986 = vpop.permute.xlu0 %985
      %989 = vset.pattern.permute.xlu0 0
      %990 = vperm.xlu0 %989, %v874
      %v991 = vpop.permute.xlu0 %990
      %994 = vset.pattern.permute.xlu0 0
      %995 = vperm.xlu0 %994, %v875
      %v996 = vpop.permute.xlu0 %995
      %999 = vset.pattern.permute.xlu0 0
      %1000 = vperm.xlu0 %999, %v876
      %v1001 = vpop.permute.xlu0 %1000
      %1004 = vset.pattern.permute.xlu0 0
      %1005 = vperm.xlu0 %1004, %v877
      %v1006 = vpop.permute.xlu0 %1005
      %1009 = vset.pattern.permute.xlu0 0
      %1010 = vperm.xlu0 %1009, %v878
      %v1011 = vpop.permute.xlu0 %1010
      %v1013 = vmul.f32 %v976, %v587
      %v1014 = vmul.f32 %v981, %v588
      %v1015 = vmul.f32 %v986, %v589
      %v1016 = vmul.f32 %v991, %v590
      %v1017 = vmul.f32 %v996, %v591
      %v1018 = vmul.f32 %v1001, %v592
      %v1019 = vmul.f32 %v1006, %v593
      %v1020 = vmul.f32 %v1011, %v594
      %v1021 = vsel %vm620, %v1013, 0.0
      %v1022 = vsel %vm620, %v1014, 0.0
      %v1023 = vadd.f32 %v1021, %v1022
      %v1024 = vsel %vm620, %v1015, 0.0
      %v1025 = vadd.f32 %v1023, %v1024
      %v1026 = vsel %vm620, %v1016, 0.0
      %v1027 = vadd.f32 %v1025, %v1026
      %v1028 = vsel %vm620, %v1017, 0.0
      %v1029 = vadd.f32 %v1027, %v1028
      %v1030 = vsel %vm620, %v1018, 0.0
      %v1031 = vadd.f32 %v1029, %v1030
      %v1032 = vsel %vm620, %v1019, 0.0
      %v1033 = vadd.f32 %v1031, %v1032
      %v1034 = vsel %vm620, %v1020, 0.0
      %v1035 = vadd.f32 %v1033, %v1034
      %v1036 = vadd.f32 %v972, %v1035
      %1037 = vst.msk [vmem:[#allocation6] sm:$0xff] %vm620, %v1036
      %p1038 = scmp.eq.s32.totalorder %s35, 2
      // Predicated region
      $region87: #{graphconsis_forward.3} parent=67 // pred_check
        %p1039 = pneg %p1038
      $region88: #{graphconsis_forward.3} parent=67 // pred_check_branch
        %1041 = sbr.rel (%p1039) target = $region90
      $region89: #{graphconsis_forward.3} parent=67 // pred_region
        %v1042 = vld [vmem:[#allocation4] sm:$0xff]
        %vm1043 = vcmp.gt.f32.partialorder %v1042, 0.0
        %v1044 = vsel %vm1043, %v1042, 1.0
        %v1045 = vrcp.pop %v1044
        %v1046 = vld [vmem:[%s449] sm:$0xff]
        %v1047 = vcvt.s32.f32 %v1046
        %v1048 = vmax.f32 %v1047, 1.0
        %v1049 = vrcp.pop %v1048
        %v1050 = vld [vmem:[#allocation5] sm:$0xff]
        %1052 = vset.pattern.permute.xlu0 0
        %1053 = vperm.xlu0 %1052, %v1045
        %v1054 = vpop.permute.xlu0 %1053
        %v1056 = vmul.f32 %v1050, %v1054
        %v1057 = vld [vmem:[#allocation6] sm:$0xff]
        %1059 = vset.pattern.permute.xlu0 0
        %1060 = vperm.xlu0 %1059, %v1049
        %v1061 = vpop.permute.xlu0 %1060
        %v1063 = vmul.f32 %v1057, %v1061
        %v1064 = vsel %vm1043, 1, 0
        %1065 = vset.pattern.permute.xlu0 0
        %1066 = vperm.xlu0 %1065, %v1064
        %v1067 = vpop.permute.xlu0 %1066
        %vm1068 = vcmp.eq.s32.totalorder %v1067, 1
        %v1069 = vsel %vm1068, %v1056, %v1063
        %v1070 = vld [vmem:[%s457] sm:$0xff]
        %v1071 = vld [vmem:[%s453] sm:$0xff]
        %1073 = vrot.lane.b32.xlu0 %v1071, 32
        %v1074 = vpop.permute.xlu0 %1073
        %1077 = vrot.lane.b32.xlu0 %v1069, 48
        %v1078 = vpop.permute.xlu0 %1077
        %vm1080 = vcmask 261120
        %v1081 = vsel %vm1080, %v1070, %v1074
        %vm1082 = vcmask 392192
        %v1083 = vsel %vm1082, %v1081, %v1078
        %v1084 = vld [vmem:[%s7] sm:$0xff]
        %v1085 = vld [vmem:[%s7 + $0x8] sm:$0xff]
        %v1086 = vld [vmem:[%s7 + $0x10] sm:$0xff]
        %v1087 = vld [vmem:[%s7 + $0x18] sm:$0xff]
        %v1088 = vld [vmem:[%s7 + $0x20] sm:$0xff]
        %v1089 = vld [vmem:[%s7 + $0x28] sm:$0xff]
        %v1090 = vld [vmem:[%s7 + $0x30] sm:$0xff]
        %v1091 = vld [vmem:[%s7 + $0x38] sm:$0xff]
        %v1092 = vld [vmem:[%s7 + $0x40] sm:$0xff]
        %v1093 = vld [vmem:[%s7 + $0x48] sm:$0xff]
        %v1094 = vld [vmem:[%s7 + $0x50] sm:$0xff]
        %v1095 = vld [vmem:[%s7 + $0x58] sm:$0xff]
        %v1096 = vld [vmem:[%s7 + $0x60] sm:$0xff]
        %v1097 = vld [vmem:[%s7 + $0x68] sm:$0xff]
        %v1098 = vld [vmem:[%s8] sm:$0x1]
        %v1100 = vlaneseq
        %v1101 = vshrl.u32 %v1100, 7
        %v1102 = vsub.s32 0, %v1101
        %v1103 = vrot.slane %v1098, %v1102
        %vm1105 = vcmask 916480
        %v1107 = vsel %vm1105, %v1083, 0
        %1109 = vmatprep.subr.mxu0 0.0
        %1110 = vmatpush1.msra.mxu0 0.0
        %1111 = vmatprep.subr.mxu0 0.0
        %1112 = vmatpush1.msra.mxu0 0.0
        %1113 = vmatprep.subr.mxu0 0.0
        %1114 = vmatpush1.msra.mxu0 %v1097
        %1115 = vmatprep.subr.mxu0 0.0
        %1116 = vmatpush1.msra.mxu0 %v1096
        %1117 = vmatprep.subr.mxu0 0.0
        %1118 = vmatpush1.msra.mxu0 %v1095
        %1119 = vmatprep.subr.mxu0 0.0
        %1120 = vmatpush1.msra.mxu0 %v1094
        %1121 = vmatprep.subr.mxu0 0.0
        %1122 = vmatpush1.msra.mxu0 %v1093
        %1123 = vmatprep.subr.mxu0 0.0
        %1124 = vmatpush1.msra.mxu0 %v1092
        %1125 = vmatprep.subr.mxu0 0.0
        %1126 = vmatpush1.msra.mxu0 %v1091
        %1127 = vmatprep.subr.mxu0 0.0
        %1128 = vmatpush1.msra.mxu0 %v1090
        %1129 = vmatprep.subr.mxu0 0.0
        %1130 = vmatpush1.msra.mxu0 %v1089
        %1131 = vmatprep.subr.mxu0 0.0
        %1132 = vmatpush1.msra.mxu0 %v1088
        %1133 = vmatprep.subr.mxu0 0.0
        %1134 = vmatpush1.msra.mxu0 %v1087
        %1135 = vmatprep.subr.mxu0 0.0
        %1136 = vmatpush1.msra.mxu0 %v1086
        %1137 = vmatprep.subr.mxu0 0.0
        %1138 = vmatpush1.msra.mxu0 %v1085
        %1139 = vmatprep.subr.mxu0 0.0
        %1140 = vmatpush1.msra.mxu0 %v1084
        %1141 = vmatprep.subr.mxu0 0.0
        %1142 = vmatpush2.msra.mxu0 0.0
        %1143 = vmatprep.subr.mxu0 0.0
        %1144 = vmatpush2.msra.mxu0 0.0
        %1145 = vmatprep.subr.mxu0 0.0
        %1146 = vmatpush2.msra.mxu0 0.0
        %1147 = vmatprep.subr.mxu0 0.0
        %1148 = vmatpush2.msra.mxu0 0.0
        %1149 = vmatprep.subr.mxu0 0.0
        %1150 = vmatpush2.msra.mxu0 0.0
        %1151 = vmatprep.subr.mxu0 0.0
        %1152 = vmatpush2.msra.mxu0 0.0
        %1153 = vmatprep.subr.mxu0 0.0
        %1154 = vmatpush2.msra.mxu0 0.0
        %1155 = vmatprep.subr.mxu0 0.0
        %1156 = vmatpush2.msra.mxu0 0.0
        %1157 = vmatprep.subr.mxu0 0.0
        %1158 = vmatpush2.msra.mxu0 0.0
        %1159 = vmatprep.subr.mxu0 0.0
        %1160 = vmatpush2.msra.mxu0 0.0
        %1161 = vmatprep.subr.mxu0 0.0
        %1162 = vmatpush2.msra.mxu0 0.0
        %1163 = vmatprep.subr.mxu0 0.0
        %1164 = vmatpush2.msra.mxu0 0.0
        %1165 = vmatprep.subr.mxu0 0.0
        %1166 = vmatpush2.msra.mxu0 0.0
        %1167 = vmatprep.subr.mxu0 0.0
        %1168 = vmatpush2.msra.mxu0 0.0
        %1169 = vmatprep.subr.mxu0 0.0
        %1170 = vmatpush2.msra.mxu0 0.0
        %1171 = vmatprep.subr.mxu0 0.0
        %1172 = vmatpush2.msra.mxu0 0.0
        %1173 = vmatprep.mubr.f32.mxu0 0.0
        %1174 = vmatmul.mubr.f32.gmra.mxu0 %v1107
        %v1175 = vpop.f32.mrf.mxu0
        %v1176 = vadd.f32 %v1103, %v1175
        %v1177 = vpop.f32.mrf.mxu0
        %1178 = vdwg.mxu0
        %v1179 = vmax.f32 %v1176, 0.0
        %v1180 = vld [vmem:[%s9] sm:$0xff]
        %v1181 = vld [vmem:[%s9 + $0x8] sm:$0xff]
        %v1182 = vld [vmem:[%s9 + $0x10] sm:$0xff]
        %v1183 = vld [vmem:[%s9 + $0x18] sm:$0xff]
        %v1184 = vld [vmem:[%s9 + $0x20] sm:$0xff]
        %v1185 = vld [vmem:[%s9 + $0x28] sm:$0xff]
        %v1186 = vld [vmem:[%s9 + $0x30] sm:$0xff]
        %v1187 = vld [vmem:[%s9 + $0x38] sm:$0xff]
        %v1188 = vld [vmem:[%s10] sm:$0x1]
        %v1190 = vlaneseq
        %v1191 = vshrl.u32 %v1190, 7
        %v1192 = vsub.s32 0, %v1191
        %v1193 = vrot.slane %v1188, %v1192
        %v1196 = vsel %vm620, %v1179, 0
        %1198 = vmatprep.subr.mxu0 0.0
        %1199 = vmatpush1.msra.mxu0 0.0
        %1200 = vmatprep.subr.mxu0 0.0
        %1201 = vmatpush1.msra.mxu0 0.0
        %1202 = vmatprep.subr.mxu0 0.0
        %1203 = vmatpush1.msra.mxu0 0.0
        %1204 = vmatprep.subr.mxu0 0.0
        %1205 = vmatpush1.msra.mxu0 0.0
        %1206 = vmatprep.subr.mxu0 0.0
        %1207 = vmatpush1.msra.mxu0 0.0
        %1208 = vmatprep.subr.mxu0 0.0
        %1209 = vmatpush1.msra.mxu0 0.0
        %1210 = vmatprep.subr.mxu0 0.0
        %1211 = vmatpush1.msra.mxu0 0.0
        %1212 = vmatprep.subr.mxu0 0.0
        %1213 = vmatpush1.msra.mxu0 0.0
        %1214 = vmatprep.subr.mxu0 0.0
        %1215 = vmatpush1.msra.mxu0 %v1187
        %1216 = vmatprep.subr.mxu0 0.0
        %1217 = vmatpush1.msra.mxu0 %v1186
        %1218 = vmatprep.subr.mxu0 0.0
        %1219 = vmatpush1.msra.mxu0 %v1185
        %1220 = vmatprep.subr.mxu0 0.0
        %1221 = vmatpush1.msra.mxu0 %v1184
        %1222 = vmatprep.subr.mxu0 0.0
        %1223 = vmatpush1.msra.mxu0 %v1183
        %1224 = vmatprep.subr.mxu0 0.0
        %1225 = vmatpush1.msra.mxu0 %v1182
        %1226 = vmatprep.subr.mxu0 0.0
        %1227 = vmatpush1.msra.mxu0 %v1181
        %1228 = vmatprep.subr.mxu0 0.0
        %1229 = vmatpush1.msra.mxu0 %v1180
        %1230 = vmatprep.subr.mxu0 0.0
        %1231 = vmatpush2.msra.mxu0 0.0
        %1232 = vmatprep.subr.mxu0 0.0
        %1233 = vmatpush2.msra.mxu0 0.0
        %1234 = vmatprep.subr.mxu0 0.0
        %1235 = vmatpush2.msra.mxu0 0.0
        %1236 = vmatprep.subr.mxu0 0.0
        %1237 = vmatpush2.msra.mxu0 0.0
        %1238 = vmatprep.subr.mxu0 0.0
        %1239 = vmatpush2.msra.mxu0 0.0
        %1240 = vmatprep.subr.mxu0 0.0
        %1241 = vmatpush2.msra.mxu0 0.0
        %1242 = vmatprep.subr.mxu0 0.0
        %1243 = vmatpush2.msra.mxu0 0.0
        %1244 = vmatprep.subr.mxu0 0.0
        %1245 = vmatpush2.msra.mxu0 0.0
        %1246 = vmatprep.subr.mxu0 0.0
        %1247 = vmatpush2.msra.mxu0 0.0
        %1248 = vmatprep.subr.mxu0 0.0
        %1249 = vmatpush2.msra.mxu0 0.0
        %1250 = vmatprep.subr.mxu0 0.0
        %1251 = vmatpush2.msra.mxu0 0.0
        %1252 = vmatprep.subr.mxu0 0.0
        %1253 = vmatpush2.msra.mxu0 0.0
        %1254 = vmatprep.subr.mxu0 0.0
        %1255 = vmatpush2.msra.mxu0 0.0
        %1256 = vmatprep.subr.mxu0 0.0
        %1257 = vmatpush2.msra.mxu0 0.0
        %1258 = vmatprep.subr.mxu0 0.0
        %1259 = vmatpush2.msra.mxu0 0.0
        %1260 = vmatprep.subr.mxu0 0.0
        %1261 = vmatpush2.msra.mxu0 0.0
        %1262 = vmatprep.mubr.f32.mxu0 0.0
        %1263 = vmatmul.mubr.f32.gmra.mxu0 %v1196
        %v1264 = vpop.f32.mrf.mxu0
        %v1265 = vadd.f32 %v1193, %v1264
        %v1266 = vpop.f32.mrf.mxu0
        %1267 = vdwg.mxu0
        %v1268 = vmax.f32 %v1265, 0.0
        %v1269 = vld [vmem:[%s11] sm:$0xff]
        %v1270 = vld [vmem:[%s11 + $0x8] sm:$0xff]
        %v1271 = vld [vmem:[%s11 + $0x10] sm:$0xff]
        %v1272 = vld [vmem:[%s11 + $0x18] sm:$0xff]
        %v1273 = vld [vmem:[%s12] sm:$0x1]
        %v1275 = vlaneseq
        %v1276 = vshrl.u32 %v1275, 7
        %v1277 = vsub.s32 0, %v1276
        %v1278 = vrot.slane %v1273, %v1277
        %v1281 = vsel %vm1080, %v1268, 0
        %1283 = vmatprep.subr.mxu0 0.0
        %1284 = vmatpush1.msra.mxu0 0.0
        %1285 = vmatprep.subr.mxu0 0.0
        %1286 = vmatpush1.msra.mxu0 0.0
        %1287 = vmatprep.subr.mxu0 0.0
        %1288 = vmatpush1.msra.mxu0 0.0
        %1289 = vmatprep.subr.mxu0 0.0
        %1290 = vmatpush1.msra.mxu0 0.0
        %1291 = vmatprep.subr.mxu0 0.0
        %1292 = vmatpush1.msra.mxu0 0.0
        %1293 = vmatprep.subr.mxu0 0.0
        %1294 = vmatpush1.msra.mxu0 0.0
        %1295 = vmatprep.subr.mxu0 0.0
        %1296 = vmatpush1.msra.mxu0 0.0
        %1297 = vmatprep.subr.mxu0 0.0
        %1298 = vmatpush1.msra.mxu0 0.0
        %1299 = vmatprep.subr.mxu0 0.0
        %1300 = vmatpush1.msra.mxu0 0.0
        %1301 = vmatprep.subr.mxu0 0.0
        %1302 = vmatpush1.msra.mxu0 0.0
        %1303 = vmatprep.subr.mxu0 0.0
        %1304 = vmatpush1.msra.mxu0 0.0
        %1305 = vmatprep.subr.mxu0 0.0
        %1306 = vmatpush1.msra.mxu0 0.0
        %1307 = vmatprep.subr.mxu0 0.0
        %1308 = vmatpush1.msra.mxu0 %v1272
        %1309 = vmatprep.subr.mxu0 0.0
        %1310 = vmatpush1.msra.mxu0 %v1271
        %1311 = vmatprep.subr.mxu0 0.0
        %1312 = vmatpush1.msra.mxu0 %v1270
        %1313 = vmatprep.subr.mxu0 0.0
        %1314 = vmatpush1.msra.mxu0 %v1269
        %1315 = vmatprep.subr.mxu0 0.0
        %1316 = vmatpush2.msra.mxu0 0.0
        %1317 = vmatprep.subr.mxu0 0.0
        %1318 = vmatpush2.msra.mxu0 0.0
        %1319 = vmatprep.subr.mxu0 0.0
        %1320 = vmatpush2.msra.mxu0 0.0
        %1321 = vmatprep.subr.mxu0 0.0
        %1322 = vmatpush2.msra.mxu0 0.0
        %1323 = vmatprep.subr.mxu0 0.0
        %1324 = vmatpush2.msra.mxu0 0.0
        %1325 = vmatprep.subr.mxu0 0.0
        %1326 = vmatpush2.msra.mxu0 0.0
        %1327 = vmatprep.subr.mxu0 0.0
        %1328 = vmatpush2.msra.mxu0 0.0
        %1329 = vmatprep.subr.mxu0 0.0
        %1330 = vmatpush2.msra.mxu0 0.0
        %1331 = vmatprep.subr.mxu0 0.0
        %1332 = vmatpush2.msra.mxu0 0.0
        %1333 = vmatprep.subr.mxu0 0.0
        %1334 = vmatpush2.msra.mxu0 0.0
        %1335 = vmatprep.subr.mxu0 0.0
        %1336 = vmatpush2.msra.mxu0 0.0
        %1337 = vmatprep.subr.mxu0 0.0
        %1338 = vmatpush2.msra.mxu0 0.0
        %1339 = vmatprep.subr.mxu0 0.0
        %1340 = vmatpush2.msra.mxu0 0.0
        %1341 = vmatprep.subr.mxu0 0.0
        %1342 = vmatpush2.msra.mxu0 0.0
        %1343 = vmatprep.subr.mxu0 0.0
        %1344 = vmatpush2.msra.mxu0 0.0
        %1345 = vmatprep.subr.mxu0 0.0
        %1346 = vmatpush2.msra.mxu0 0.0
        %1347 = vmatprep.mubr.f32.mxu0 0.0
        %1348 = vmatmul.mubr.f32.gmra.mxu0 %v1281
        %v1349 = vpop.f32.mrf.mxu0
        %v1350 = vadd.f32 %v1278, %v1349
        %v1351 = vpop.f32.mrf.mxu0
        %1352 = vdwg.mxu0
        %v1353 = vand.u32 2147483647, %v1350
        %v1354 = vsub.f32 0.0, %v1353
        %v1355 = vmul.f32 %v1354, 1.442695
        %v1356 = vpow.pop %v1355
        %vm1357 = vcmp.ge.f32.partialorder %v1350, 0.0
        %v1358 = vadd.f32 %v1356, 1.0
        %v1359 = vrcp.pop %v1358
        %v1360 = vmul.f32 1.0, %v1359
        %v1361 = vmul.f32 %v1356, %v1359
        %v1362 = vsel %vm1357, %v1360, %v1361
        %vm1363 = vcmask 15360
        %1364 = vst.msk [vmem:[%s461] sm:$0xff] %vm1363, %v1362
      $region90: #{graphconsis_forward.3} parent=67 // pred_fallthru
        _
      %p1365 = scmp.lt.s32.totalorder %s34, 1
      %s1366 = scalar_select %p1365, %s34, 1
      %s1367 = smul.addr %s1366, 8
      %s1368 = scalar_lea.vmem %s13, %s1367
      // Predicated region
      $region91: #{graphconsis_forward.3} parent=67 // pred_check
        %p1369 = pneg %p327
      $region92: #{graphconsis_forward.3} parent=67 // pred_check_branch
        %1371 = sbr.rel (%p1369) target = $region94
      $region93: #{graphconsis_forward.3} parent=67 // pred_region
        _
      $region94: #{graphconsis_forward.3} parent=67 // pred_fallthru
        _
    $region68: #{graphconsis_forward.3} parent=5 // pred_fallthru
      _
    %p1372 = scmp.le.s32.totalorder 2, %s25
    // Predicated region
    $region95: #{graphconsis_forward.3} parent=5 // pred_check
      %p1373 = pneg %p1372
    $region96: #{graphconsis_forward.3} parent=5 // pred_check_branch
      %1375 = sbr.rel (%p1373) target = $region98
    $region97: #{graphconsis_forward.3} parent=5 // pred_region
      %s1376 = ssub.s32 %s25, 2
      // Predicated region
      $region99: #{graphconsis_forward.3} parent=97 // pred_check
        %p1377 = pneg %p333
      $region100: #{graphconsis_forward.3} parent=97 // pred_check_branch
        %1379 = sbr.rel (%p1377) target = $region102
      $region101: #{graphconsis_forward.3} parent=97 // pred_region
        %p1380 = scmp.lt.s32.totalorder %s36, 1
        %s1381 = scalar_select %p1380, %s36, 1
        %s1382 = smul.addr %s1381, 8
        %s1383 = scalar_lea.vmem %s13, %s1382
      $region102: #{graphconsis_forward.3} parent=97 // pred_fallthru
        _
    $region98: #{graphconsis_forward.3} parent=5 // pred_fallthru
      _
  $region6: #{graphconsis_forward.3} parent=0 // loop_footer
    %s29 = sadd.s32 1, %s25
  $region7: #{graphconsis_forward.3} parent=0 // loop_footer_branch
    %24 = sbr.rel target = $region3
  $region8: #{graphconsis_forward.3} parent=0 // loop_exit
    _

</llo_original>
